<compile_context>
chip_gen: v6e
topology: v6e:2x2x1
jax: 0.10.0
libtpu: 0.0.40
codegen_flags: <defaults>
</compile_context>

<pallas_src>
import functools

import jax
import jax.numpy as jnp
from jax.experimental import pallas as pl
from jax.experimental.pallas import tpu as pltpu

STATE_SIZE = 8      # LunarLander-v2 observation dim
ACTION_SIZE = 4     # unused by Critic.forward, kept for parity with __init__
H1 = 128
H2 = 256
OUT = 1

_LANE = 128         # TPU lane width


def _critic_kernel(x_ref, w1_ref, b1_ref, w2_ref, b2_ref, w3_ref, b3_ref,
                   out_ref):
    # x_ref : (S, TB)   state transposed, batch on lanes
    # w1_ref: (H1, S)   b1_ref: (H1, 1)
    # w2_ref: (H2, H1)  b2_ref: (H2, 1)
    # w3_ref: (H2, 1)   b3_ref: (1, 1)
    # out_ref: (1, TB)  lane-dense value row
    tb = x_ref.shape[1]
    x = x_ref[...]                                    # (S, TB)
    w1 = w1_ref[...]                                  # (H1, S)

    # ---- layer 1: VPU broadcast-FMAs (K=8 is MXU-hostile) -----------------
    h1 = jnp.broadcast_to(b1_ref[...], (H1, tb))      # bias hoisted once
    for k in range(STATE_SIZE):                       # static unroll (8)
        h1 = h1 + w1[:, k:k + 1] * x[k:k + 1, :]
    h1 = jnp.maximum(h1, 0.0)                         # (H1, TB)

    # ---- layer 2: MXU matmul, f32 accumulation ----------------------------
    h2 = jnp.dot(w2_ref[...], h1,
                 preferred_element_type=jnp.float32) + b2_ref[...]
    h2 = jnp.maximum(h2, 0.0)                         # (H2, TB)

    # ---- layer 3: VPU multiply + sublane (XLU) reduction, N=1 -------------
    v = jnp.sum(h2 * w3_ref[...], axis=0, keepdims=True) + b3_ref[...]
    out_ref[...] = v                                  # (1, TB), lane-dense


@functools.partial(jax.jit, static_argnames=("tb",))
def critic_forward(state, params, *, tb=512):
    """state: [B, STATE_SIZE] f32 -> value: [B, 1] f32."""
    w1, b1, w2, b2, w3, b3 = params
    B = state.shape[0]

    # Batch tile: multiple of the 128-lane width, capped at `tb`.
    b_pad_lane = ((B + _LANE - 1) // _LANE) * _LANE
    TB = min(tb, b_pad_lane)
    n_tiles = pl.cdiv(b_pad_lane, TB)
    B_pad = n_tiles * TB

    # Transpose so batch sits on the lane axis; pad to the tile boundary
    # (layout plumbing only, done outside the kernel).
    x_t = jnp.transpose(state)                        # (S, B)
    if B_pad != B:
        x_t = jnp.pad(x_t, ((0, 0), (0, B_pad - B)))

    const = lambda a: pl.BlockSpec(a.shape, lambda i: (0,) * a.ndim)

    out = pl.pallas_call(
        _critic_kernel,
        out_shape=jax.ShapeDtypeStruct((1, B_pad), jnp.float32),
        grid=(n_tiles,),
        in_specs=[
            pl.BlockSpec((STATE_SIZE, TB), lambda i: (0, i)),   # x^T tiles
            const(w1), const(b1),                               # VMEM-resident
            const(w2), const(b2),
            const(w3), const(b3),
        ],
        out_specs=pl.BlockSpec((1, TB), lambda i: (0, i)),
        compiler_params=pltpu.CompilerParams(
            dimension_semantics=("parallel",)),       # megacore on v7x
    )(x_t, w1, b1, w2, b2, w3, b3)

    return out[:, :B].T                               # (B, 1)


def init_params(key):
    """PyTorch nn.Linear-style init (uniform +-1/sqrt(fan_in)).

    Weights are stored PyTorch-style as (out_features, in_features); biases as
    (out_features, 1) columns.  w3 is kept as a (H2, 1) column (linear3.weight.T)
    for the in-kernel broadcast-multiply.
    """
    def linear(key, fan_in, fan_out):
        kw, kb = jax.random.split(key)
        bound = 1.0 / (fan_in ** 0.5)
        w = jax.random.uniform(kw, (fan_out, fan_in), jnp.float32,
                               -bound, bound)
        b = jax.random.uniform(kb, (fan_out, 1), jnp.float32, -bound, bound)
        return w, b

    k1, k2, k3 = jax.random.split(key, 3)
    w1, b1 = linear(k1, STATE_SIZE, H1)
    w2, b2 = linear(k2, H1, H2)
    w3_row, b3 = linear(k3, H2, OUT)                  # w3_row: (1, H2)
    w3 = w3_row.T                                     # (H2, 1) column
    b3 = b3.reshape(1, 1)
    return (w1, b1, w2, b2, w3, b3)


if __name__ == "__main__":
    key = jax.random.PRNGKey(0)
    k_params, k_state = jax.random.split(key)

    params = init_params(k_params)
    batch = 8
    state = jax.random.normal(k_state, (batch, STATE_SIZE), jnp.float32)

    value = critic_forward(state, params)
    value = jax.block_until_ready(value)

    # Pure-JAX reference of the PyTorch forward.
    w1, b1, w2, b2, w3, b3 = params
    h1 = jnp.maximum(state @ w1.T + b1[:, 0], 0.0)
    h2 = jnp.maximum(h1 @ w2.T + b2[:, 0], 0.0)
    ref = h2 @ w3 + b3                                # (B, 1)

    assert value.shape == (batch, OUT)
    assert jnp.allclose(value, ref, atol=1e-5, rtol=1e-5), (
        float(jnp.max(jnp.abs(value - ref))))

    print("KERNEL_OK")
</pallas_src>

<mosaic_0001>
module attributes {stable_mosaic.version = 11 : i64} {
  func.func @_critic_kernel(%arg0: i32, %arg1: memref<8x128xf32, #tpu.memory_space<vmem>>, %arg2: memref<128x8xf32, #tpu.memory_space<vmem>>, %arg3: memref<128x1xf32, #tpu.memory_space<vmem>>, %arg4: memref<256x128xf32, #tpu.memory_space<vmem>>, %arg5: memref<256x1xf32, #tpu.memory_space<vmem>>, %arg6: memref<256x1xf32, #tpu.memory_space<vmem>>, %arg7: memref<1x1xf32, #tpu.memory_space<vmem>>, %arg8: memref<1x128xf32, #tpu.memory_space<vmem>>) attributes {dimension_semantics = [#tpu.dimension_semantics<parallel>], iteration_bounds = array<i64: 1>, scalar_prefetch = 0 : i64, scratch_operands = 0 : i64, tpu.core_type = #tpu.core_type<tc>, window_params = [{transform_indices = @transform_0, window_bounds = array<i64: 8, 128>}, {pipeline_mode = #tpu.pipeline_mode<synchronous>, transform_indices = @transform_1, window_bounds = array<i64: 128, 8>}, {pipeline_mode = #tpu.pipeline_mode<synchronous>, transform_indices = @transform_2, window_bounds = array<i64: 128, 1>}, {pipeline_mode = #tpu.pipeline_mode<synchronous>, transform_indices = @transform_3, window_bounds = array<i64: 256, 128>}, {pipeline_mode = #tpu.pipeline_mode<synchronous>, transform_indices = @transform_4, window_bounds = array<i64: 256, 1>}, {pipeline_mode = #tpu.pipeline_mode<synchronous>, transform_indices = @transform_5, window_bounds = array<i64: 256, 1>}, {pipeline_mode = #tpu.pipeline_mode<synchronous>, transform_indices = @transform_6, window_bounds = array<i64: 1, 1>}, {transform_indices = @transform_7, window_bounds = array<i64: 1, 128>}]} {
    %c0 = arith.constant 0 : index
    %c0_0 = arith.constant 0 : index
    %0 = vector.load %arg1[%c0, %c0_0] : memref<8x128xf32, #tpu.memory_space<vmem>>, vector<8x128xf32>
    %c0_1 = arith.constant 0 : index
    %c0_2 = arith.constant 0 : index
    %1 = vector.load %arg2[%c0_1, %c0_2] : memref<128x8xf32, #tpu.memory_space<vmem>>, vector<128x8xf32>
    %c0_3 = arith.constant 0 : index
    %c0_4 = arith.constant 0 : index
    %2 = vector.load %arg3[%c0_3, %c0_4] : memref<128x1xf32, #tpu.memory_space<vmem>>, vector<128x1xf32>
    %3 = vector.shape_cast %2 : vector<128x1xf32> to vector<128x1xf32>
    %4 = vector.broadcast %3 : vector<128x1xf32> to vector<128x128xf32>
    %5 = vector.extract_strided_slice %1 {offsets = [0, 0], sizes = [128, 1], strides = [1, 1]} : vector<128x8xf32> to vector<128x1xf32>
    %6 = vector.extract_strided_slice %0 {offsets = [0, 0], sizes = [1, 128], strides = [1, 1]} : vector<8x128xf32> to vector<1x128xf32>
    %7 = vector.broadcast %5 : vector<128x1xf32> to vector<128x128xf32>
    %8 = vector.broadcast %6 : vector<1x128xf32> to vector<128x128xf32>
    %9 = arith.mulf %7, %8 : vector<128x128xf32>
    %10 = arith.addf %4, %9 : vector<128x128xf32>
    %11 = vector.extract_strided_slice %1 {offsets = [0, 1], sizes = [128, 1], strides = [1, 1]} : vector<128x8xf32> to vector<128x1xf32>
    %12 = vector.extract_strided_slice %0 {offsets = [1, 0], sizes = [1, 128], strides = [1, 1]} : vector<8x128xf32> to vector<1x128xf32>
    %13 = vector.broadcast %11 : vector<128x1xf32> to vector<128x128xf32>
    %14 = vector.broadcast %12 : vector<1x128xf32> to vector<128x128xf32>
    %15 = arith.mulf %13, %14 : vector<128x128xf32>
    %16 = arith.addf %10, %15 : vector<128x128xf32>
    %17 = vector.extract_strided_slice %1 {offsets = [0, 2], sizes = [128, 1], strides = [1, 1]} : vector<128x8xf32> to vector<128x1xf32>
    %18 = vector.extract_strided_slice %0 {offsets = [2, 0], sizes = [1, 128], strides = [1, 1]} : vector<8x128xf32> to vector<1x128xf32>
    %19 = vector.broadcast %17 : vector<128x1xf32> to vector<128x128xf32>
    %20 = vector.broadcast %18 : vector<1x128xf32> to vector<128x128xf32>
    %21 = arith.mulf %19, %20 : vector<128x128xf32>
    %22 = arith.addf %16, %21 : vector<128x128xf32>
    %23 = vector.extract_strided_slice %1 {offsets = [0, 3], sizes = [128, 1], strides = [1, 1]} : vector<128x8xf32> to vector<128x1xf32>
    %24 = vector.extract_strided_slice %0 {offsets = [3, 0], sizes = [1, 128], strides = [1, 1]} : vector<8x128xf32> to vector<1x128xf32>
    %25 = vector.broadcast %23 : vector<128x1xf32> to vector<128x128xf32>
    %26 = vector.broadcast %24 : vector<1x128xf32> to vector<128x128xf32>
    %27 = arith.mulf %25, %26 : vector<128x128xf32>
    %28 = arith.addf %22, %27 : vector<128x128xf32>
    %29 = vector.extract_strided_slice %1 {offsets = [0, 4], sizes = [128, 1], strides = [1, 1]} : vector<128x8xf32> to vector<128x1xf32>
    %30 = vector.extract_strided_slice %0 {offsets = [4, 0], sizes = [1, 128], strides = [1, 1]} : vector<8x128xf32> to vector<1x128xf32>
    %31 = vector.broadcast %29 : vector<128x1xf32> to vector<128x128xf32>
    %32 = vector.broadcast %30 : vector<1x128xf32> to vector<128x128xf32>
    %33 = arith.mulf %31, %32 : vector<128x128xf32>
    %34 = arith.addf %28, %33 : vector<128x128xf32>
    %35 = vector.extract_strided_slice %1 {offsets = [0, 5], sizes = [128, 1], strides = [1, 1]} : vector<128x8xf32> to vector<128x1xf32>
    %36 = vector.extract_strided_slice %0 {offsets = [5, 0], sizes = [1, 128], strides = [1, 1]} : vector<8x128xf32> to vector<1x128xf32>
    %37 = vector.broadcast %35 : vector<128x1xf32> to vector<128x128xf32>
    %38 = vector.broadcast %36 : vector<1x128xf32> to vector<128x128xf32>
    %39 = arith.mulf %37, %38 : vector<128x128xf32>
    %40 = arith.addf %34, %39 : vector<128x128xf32>
    %41 = vector.extract_strided_slice %1 {offsets = [0, 6], sizes = [128, 1], strides = [1, 1]} : vector<128x8xf32> to vector<128x1xf32>
    %42 = vector.extract_strided_slice %0 {offsets = [6, 0], sizes = [1, 128], strides = [1, 1]} : vector<8x128xf32> to vector<1x128xf32>
    %43 = vector.broadcast %41 : vector<128x1xf32> to vector<128x128xf32>
    %44 = vector.broadcast %42 : vector<1x128xf32> to vector<128x128xf32>
    %45 = arith.mulf %43, %44 : vector<128x128xf32>
    %46 = arith.addf %40, %45 : vector<128x128xf32>
    %47 = vector.extract_strided_slice %1 {offsets = [0, 7], sizes = [128, 1], strides = [1, 1]} : vector<128x8xf32> to vector<128x1xf32>
    %48 = vector.extract_strided_slice %0 {offsets = [7, 0], sizes = [1, 128], strides = [1, 1]} : vector<8x128xf32> to vector<1x128xf32>
    %49 = vector.broadcast %47 : vector<128x1xf32> to vector<128x128xf32>
    %50 = vector.broadcast %48 : vector<1x128xf32> to vector<128x128xf32>
    %51 = arith.mulf %49, %50 : vector<128x128xf32>
    %52 = arith.addf %46, %51 : vector<128x128xf32>
    %cst = arith.constant 0.000000e+00 : f32
    %53 = vector.broadcast %cst : f32 to vector<128x128xf32>
    %54 = arith.maximumf %52, %53 : vector<128x128xf32>
    %c0_5 = arith.constant 0 : index
    %c0_6 = arith.constant 0 : index
    %55 = vector.load %arg4[%c0_5, %c0_6] : memref<256x128xf32, #tpu.memory_space<vmem>>, vector<256x128xf32>
    %cst_7 = arith.constant dense<0.000000e+00> : vector<256x128xf32>
    %56 = tpu.matmul %55, %54, %cst_7 {dimension_numbers = #tpu.dot_dimension_numbers<[1], [0], [0], [1], [0, 0, 1, 1], [], []>} : vector<256x128xf32>, vector<128x128xf32>, vector<256x128xf32> -> vector<256x128xf32>
    %c0_8 = arith.constant 0 : index
    %c0_9 = arith.constant 0 : index
    %57 = vector.load %arg5[%c0_8, %c0_9] : memref<256x1xf32, #tpu.memory_space<vmem>>, vector<256x1xf32>
    %58 = vector.broadcast %57 : vector<256x1xf32> to vector<256x128xf32>
    %59 = arith.addf %56, %58 : vector<256x128xf32>
    %cst_10 = arith.constant 0.000000e+00 : f32
    %60 = vector.broadcast %cst_10 : f32 to vector<256x128xf32>
    %61 = arith.maximumf %59, %60 : vector<256x128xf32>
    %c0_11 = arith.constant 0 : index
    %c0_12 = arith.constant 0 : index
    %62 = vector.load %arg6[%c0_11, %c0_12] : memref<256x1xf32, #tpu.memory_space<vmem>>, vector<256x1xf32>
    %63 = vector.broadcast %62 : vector<256x1xf32> to vector<256x128xf32>
    %64 = arith.mulf %61, %63 : vector<256x128xf32>
    %cst_13 = arith.constant dense<0.000000e+00> : vector<128xf32>
    %65 = vector.multi_reduction <add>, %64, %cst_13 [0] : vector<256x128xf32> to vector<128xf32>
    %66 = vector.shape_cast %65 : vector<128xf32> to vector<1x128xf32>
    %c0_14 = arith.constant 0 : index
    %c0_15 = arith.constant 0 : index
    %67 = vector.load %arg7[%c0_14, %c0_15] : memref<1x1xf32, #tpu.memory_space<vmem>>, vector<1x1xf32>
    %68 = vector.broadcast %67 : vector<1x1xf32> to vector<1x128xf32>
    %69 = arith.addf %66, %68 : vector<1x128xf32>
    %c0_16 = arith.constant 0 : index
    %c0_17 = arith.constant 0 : index
    %70 = vector.load %arg8[%c0_16, %c0_17] : memref<1x128xf32, #tpu.memory_space<vmem>>, vector<1x128xf32>
    tpu.vector_store %arg8[%c0_16, %c0_17], %69 {strides = array<i32>} : memref<1x128xf32, #tpu.memory_space<vmem>>, vector<1x128xf32>,
    return
  }
  func.func @transform_0(%arg0: i32) -> (i32, i32) {
    %c0_i32 = arith.constant 0 : i32
    %c0_i32_0 = arith.constant 0 : i32
    return %c0_i32, %arg0 : i32, i32
  }
  func.func @transform_1(%arg0: i32) -> (i32, i32) {
    %c0_i32 = arith.constant 0 : i32
    %c0_i32_0 = arith.constant 0 : i32
    %c0_i32_1 = arith.constant 0 : i32
    return %c0_i32, %c0_i32_0 : i32, i32
  }
  func.func @transform_2(%arg0: i32) -> (i32, i32) {
    %c0_i32 = arith.constant 0 : i32
    %c0_i32_0 = arith.constant 0 : i32
    %c0_i32_1 = arith.constant 0 : i32
    return %c0_i32, %c0_i32_0 : i32, i32
  }
  func.func @transform_3(%arg0: i32) -> (i32, i32) {
    %c0_i32 = arith.constant 0 : i32
    %c0_i32_0 = arith.constant 0 : i32
    %c0_i32_1 = arith.constant 0 : i32
    return %c0_i32, %c0_i32_0 : i32, i32
  }
  func.func @transform_4(%arg0: i32) -> (i32, i32) {
    %c0_i32 = arith.constant 0 : i32
    %c0_i32_0 = arith.constant 0 : i32
    %c0_i32_1 = arith.constant 0 : i32
    return %c0_i32, %c0_i32_0 : i32, i32
  }
  func.func @transform_5(%arg0: i32) -> (i32, i32) {
    %c0_i32 = arith.constant 0 : i32
    %c0_i32_0 = arith.constant 0 : i32
    %c0_i32_1 = arith.constant 0 : i32
    return %c0_i32, %c0_i32_0 : i32, i32
  }
  func.func @transform_6(%arg0: i32) -> (i32, i32) {
    %c0_i32 = arith.constant 0 : i32
    %c0_i32_0 = arith.constant 0 : i32
    %c0_i32_1 = arith.constant 0 : i32
    return %c0_i32, %c0_i32_0 : i32, i32
  }
  func.func @transform_7(%arg0: i32) -> (i32, i32) {
    %c0_i32 = arith.constant 0 : i32
    %c0_i32_0 = arith.constant 0 : i32
    return %c0_i32, %arg0 : i32, i32
  }
}

</mosaic_0001>

<llo_original>
// kernel: critic_forward.1
$region0: #{critic_forward.1}
  #allocation0 [shape = 'u32[]', space=smem, size = 0x4, offset = 0x4, fixed_abs, tag = 'smem constant byte address 0x4 - core index']
  #allocation1 [shape = 'u32[144,128]{1,0:T(1,128)}', space=vmem, size = 0x12000, scoped, tag = 'internal scratch']
  #allocation2 [shape = 'f32[1,1]{1,0:T(1,128)S(1)}', space=vmem, size = 0x200, scoped, tag = 'scoped memory for critic_forward.1']
  %s0 = inlined_call_operand.vmem [shape: f32[8,128], index: 0, kind: input, shape index: {}]
  %s1 = inlined_call_operand.vmem [shape: f32[128,8], index: 1, kind: input, shape index: {}]
  %s2 = inlined_call_operand.vmem [shape: f32[128,1], index: 2, kind: input, shape index: {}]
  %s3 = inlined_call_operand.vmem [shape: f32[256,128], index: 3, kind: input, shape index: {}]
  %s4 = inlined_call_operand.vmem [shape: f32[256,1], index: 4, kind: input, shape index: {}]
  %s5 = inlined_call_operand.vmem [shape: f32[256,1], index: 5, kind: input, shape index: {}]
  %s6 = inlined_call_operand.<no memory space> [shape: f32[1,1], index: 6, kind: input, shape index: {}]
  %s7 = inlined_call_operand.vmem [shape: f32[1,128], index: 7, kind: output, shape index: {}]
  %s8 = sld [smem:[#allocation0]]
  $region38: #{critic_forward.1} parent=0
    _
  %s10 = ssub.s32 1, %s8
  %s11 = scalar_select 0, %s10, %s8
  %v12 = vstv %s6
  %13 = vst [vmem:[#allocation2] sm:$0x1] %v12
  // Predicated region
  $region2: #{critic_forward.1} parent=0 // pred_check
    _
  $region3: #{critic_forward.1} parent=0 // pred_check_branch
    %15 = sbr.rel (0) target = $region5
  $region4: #{critic_forward.1} parent=0 // pred_region
    _
  $region5: #{critic_forward.1} parent=0 // pred_fallthru
    _
  // Predicated region
  $region6: #{critic_forward.1} parent=0 // pred_check
    _
  $region7: #{critic_forward.1} parent=0 // pred_check_branch
    %17 = sbr.rel (0) target = $region9
  $region8: #{critic_forward.1} parent=0 // pred_region
    _
  $region9: #{critic_forward.1} parent=0 // pred_fallthru
    _
  // Predicated region
  $region10: #{critic_forward.1} parent=0 // pred_check
    _
  $region11: #{critic_forward.1} parent=0 // pred_check_branch
    %19 = sbr.rel (0) target = $region13
  $region12: #{critic_forward.1} parent=0 // pred_region
    _
  $region13: #{critic_forward.1} parent=0 // pred_fallthru
    _
  // Predicated region
  $region14: #{critic_forward.1} parent=0 // pred_check
    _
  $region15: #{critic_forward.1} parent=0 // pred_check_branch
    %21 = sbr.rel (0) target = $region17
  $region16: #{critic_forward.1} parent=0 // pred_region
    _
  $region17: #{critic_forward.1} parent=0 // pred_fallthru
    _
  // Predicated region
  $region18: #{critic_forward.1} parent=0 // pred_check
    _
  $region19: #{critic_forward.1} parent=0 // pred_check_branch
    %23 = sbr.rel (0) target = $region21
  $region20: #{critic_forward.1} parent=0 // pred_region
    _
  $region21: #{critic_forward.1} parent=0 // pred_fallthru
    _
  // Predicated region
  $region22: #{critic_forward.1} parent=0 // pred_check
    _
  $region23: #{critic_forward.1} parent=0 // pred_check_branch
    %25 = sbr.rel (0) target = $region25
  $region24: #{critic_forward.1} parent=0 // pred_region
    _
  $region25: #{critic_forward.1} parent=0 // pred_fallthru
    _
  // Predicated region
  $region26: #{critic_forward.1} parent=0 // pred_check
    _
  $region27: #{critic_forward.1} parent=0 // pred_check_branch
    %27 = sbr.rel (0) target = $region29
  $region28: #{critic_forward.1} parent=0 // pred_region
    _
  $region29: #{critic_forward.1} parent=0 // pred_fallthru
    _
  %v28 = vld [vmem:[%s0] sm:$0xff]
  %v29 = vld [vmem:[%s1] sm:$0xff]
  %v30 = vld [vmem:[%s1 + $0x8] sm:$0xff]
  %v31 = vld [vmem:[%s1 + $0x10] sm:$0xff]
  %v32 = vld [vmem:[%s1 + $0x18] sm:$0xff]
  %v33 = vld [vmem:[%s1 + $0x20] sm:$0xff]
  %v34 = vld [vmem:[%s1 + $0x28] sm:$0xff]
  %v35 = vld [vmem:[%s1 + $0x30] sm:$0xff]
  %v36 = vld [vmem:[%s1 + $0x38] sm:$0xff]
  %v37 = vld [vmem:[%s1 + $0x40] sm:$0xff]
  %v38 = vld [vmem:[%s1 + $0x48] sm:$0xff]
  %v39 = vld [vmem:[%s1 + $0x50] sm:$0xff]
  %v40 = vld [vmem:[%s1 + $0x58] sm:$0xff]
  %v41 = vld [vmem:[%s1 + $0x60] sm:$0xff]
  %v42 = vld [vmem:[%s1 + $0x68] sm:$0xff]
  %v43 = vld [vmem:[%s1 + $0x70] sm:$0xff]
  %v44 = vld [vmem:[%s1 + $0x78] sm:$0xff]
  %v45 = vld [vmem:[%s2] sm:$0xff]
  %v46 = vld [vmem:[%s2 + $0x8] sm:$0xff]
  %v47 = vld [vmem:[%s2 + $0x10] sm:$0xff]
  %v48 = vld [vmem:[%s2 + $0x18] sm:$0xff]
  %v49 = vld [vmem:[%s2 + $0x20] sm:$0xff]
  %v50 = vld [vmem:[%s2 + $0x28] sm:$0xff]
  %v51 = vld [vmem:[%s2 + $0x30] sm:$0xff]
  %v52 = vld [vmem:[%s2 + $0x38] sm:$0xff]
  %v53 = vld [vmem:[%s2 + $0x40] sm:$0xff]
  %v54 = vld [vmem:[%s2 + $0x48] sm:$0xff]
  %v55 = vld [vmem:[%s2 + $0x50] sm:$0xff]
  %v56 = vld [vmem:[%s2 + $0x58] sm:$0xff]
  %v57 = vld [vmem:[%s2 + $0x60] sm:$0xff]
  %v58 = vld [vmem:[%s2 + $0x68] sm:$0xff]
  %v59 = vld [vmem:[%s2 + $0x70] sm:$0xff]
  %v60 = vld [vmem:[%s2 + $0x78] sm:$0xff]
  %62 = vset.pattern.permute.xlu0 0
  %63 = vperm.xlu0 %62, %v45
  %v64 = vpop.permute.xlu0 %63
  %67 = vset.pattern.permute.xlu0 0
  %68 = vperm.xlu0 %67, %v46
  %v69 = vpop.permute.xlu0 %68
  %72 = vset.pattern.permute.xlu0 0
  %73 = vperm.xlu0 %72, %v47
  %v74 = vpop.permute.xlu0 %73
  %77 = vset.pattern.permute.xlu0 0
  %78 = vperm.xlu0 %77, %v48
  %v79 = vpop.permute.xlu0 %78
  %82 = vset.pattern.permute.xlu0 0
  %83 = vperm.xlu0 %82, %v49
  %v84 = vpop.permute.xlu0 %83
  %87 = vset.pattern.permute.xlu0 0
  %88 = vperm.xlu0 %87, %v50
  %v89 = vpop.permute.xlu0 %88
  %92 = vset.pattern.permute.xlu0 0
  %93 = vperm.xlu0 %92, %v51
  %v94 = vpop.permute.xlu0 %93
  %97 = vset.pattern.permute.xlu0 0
  %98 = vperm.xlu0 %97, %v52
  %v99 = vpop.permute.xlu0 %98
  %102 = vset.pattern.permute.xlu0 0
  %103 = vperm.xlu0 %102, %v53
  %v104 = vpop.permute.xlu0 %103
  %107 = vset.pattern.permute.xlu0 0
  %108 = vperm.xlu0 %107, %v54
  %v109 = vpop.permute.xlu0 %108
  %112 = vset.pattern.permute.xlu0 0
  %113 = vperm.xlu0 %112, %v55
  %v114 = vpop.permute.xlu0 %113
  %117 = vset.pattern.permute.xlu0 0
  %118 = vperm.xlu0 %117, %v56
  %v119 = vpop.permute.xlu0 %118
  %122 = vset.pattern.permute.xlu0 0
  %123 = vperm.xlu0 %122, %v57
  %v124 = vpop.permute.xlu0 %123
  %127 = vset.pattern.permute.xlu0 0
  %128 = vperm.xlu0 %127, %v58
  %v129 = vpop.permute.xlu0 %128
  %132 = vset.pattern.permute.xlu0 0
  %133 = vperm.xlu0 %132, %v59
  %v134 = vpop.permute.xlu0 %133
  %137 = vset.pattern.permute.xlu0 0
  %138 = vperm.xlu0 %137, %v60
  %v139 = vpop.permute.xlu0 %138
  %142 = vset.pattern.permute.xlu0 0
  %143 = vperm.xlu0 %142, %v29
  %v144 = vpop.permute.xlu0 %143
  %147 = vset.pattern.permute.xlu0 0
  %148 = vperm.xlu0 %147, %v30
  %v149 = vpop.permute.xlu0 %148
  %152 = vset.pattern.permute.xlu0 0
  %153 = vperm.xlu0 %152, %v31
  %v154 = vpop.permute.xlu0 %153
  %157 = vset.pattern.permute.xlu0 0
  %158 = vperm.xlu0 %157, %v32
  %v159 = vpop.permute.xlu0 %158
  %162 = vset.pattern.permute.xlu0 0
  %163 = vperm.xlu0 %162, %v33
  %v164 = vpop.permute.xlu0 %163
  %167 = vset.pattern.permute.xlu0 0
  %168 = vperm.xlu0 %167, %v34
  %v169 = vpop.permute.xlu0 %168
  %172 = vset.pattern.permute.xlu0 0
  %173 = vperm.xlu0 %172, %v35
  %v174 = vpop.permute.xlu0 %173
  %177 = vset.pattern.permute.xlu0 0
  %178 = vperm.xlu0 %177, %v36
  %v179 = vpop.permute.xlu0 %178
  %182 = vset.pattern.permute.xlu0 0
  %183 = vperm.xlu0 %182, %v37
  %v184 = vpop.permute.xlu0 %183
  %187 = vset.pattern.permute.xlu0 0
  %188 = vperm.xlu0 %187, %v38
  %v189 = vpop.permute.xlu0 %188
  %192 = vset.pattern.permute.xlu0 0
  %193 = vperm.xlu0 %192, %v39
  %v194 = vpop.permute.xlu0 %193
  %197 = vset.pattern.permute.xlu0 0
  %198 = vperm.xlu0 %197, %v40
  %v199 = vpop.permute.xlu0 %198
  %202 = vset.pattern.permute.xlu0 0
  %203 = vperm.xlu0 %202, %v41
  %v204 = vpop.permute.xlu0 %203
  %207 = vset.pattern.permute.xlu0 0
  %208 = vperm.xlu0 %207, %v42
  %v209 = vpop.permute.xlu0 %208
  %212 = vset.pattern.permute.xlu0 0
  %213 = vperm.xlu0 %212, %v43
  %v214 = vpop.permute.xlu0 %213
  %217 = vset.pattern.permute.xlu0 0
  %218 = vperm.xlu0 %217, %v44
  %v219 = vpop.permute.xlu0 %218
  %v221 = vlaneseq
  %v222 = vshrl.u32 %v221, 7
  %v223 = vsub.s32 0, %v222
  %v224 = vrot.slane %v28, %v223
  %v225 = vmul.f32 %v144, %v224
  %v226 = vmul.f32 %v149, %v224
  %v227 = vmul.f32 %v154, %v224
  %v228 = vmul.f32 %v159, %v224
  %v229 = vmul.f32 %v164, %v224
  %v230 = vmul.f32 %v169, %v224
  %v231 = vmul.f32 %v174, %v224
  %v232 = vmul.f32 %v179, %v224
  %v233 = vmul.f32 %v184, %v224
  %v234 = vmul.f32 %v189, %v224
  %v235 = vmul.f32 %v194, %v224
  %v236 = vmul.f32 %v199, %v224
  %v237 = vmul.f32 %v204, %v224
  %v238 = vmul.f32 %v209, %v224
  %v239 = vmul.f32 %v214, %v224
  %v240 = vmul.f32 %v219, %v224
  %v241 = vadd.f32 %v64, %v225
  %v242 = vadd.f32 %v69, %v226
  %v243 = vadd.f32 %v74, %v227
  %v244 = vadd.f32 %v79, %v228
  %v245 = vadd.f32 %v84, %v229
  %v246 = vadd.f32 %v89, %v230
  %v247 = vadd.f32 %v94, %v231
  %v248 = vadd.f32 %v99, %v232
  %v249 = vadd.f32 %v104, %v233
  %v250 = vadd.f32 %v109, %v234
  %v251 = vadd.f32 %v114, %v235
  %v252 = vadd.f32 %v119, %v236
  %v253 = vadd.f32 %v124, %v237
  %v254 = vadd.f32 %v129, %v238
  %v255 = vadd.f32 %v134, %v239
  %v256 = vadd.f32 %v139, %v240
  %257 = vset.pattern.permute.xlu0 1
  %258 = vperm.xlu0 %257, %v29
  %v259 = vpop.permute.xlu0 %258
  %261 = vset.pattern.permute.xlu0 1
  %262 = vperm.xlu0 %261, %v30
  %v263 = vpop.permute.xlu0 %262
  %265 = vset.pattern.permute.xlu0 1
  %266 = vperm.xlu0 %265, %v31
  %v267 = vpop.permute.xlu0 %266
  %269 = vset.pattern.permute.xlu0 1
  %270 = vperm.xlu0 %269, %v32
  %v271 = vpop.permute.xlu0 %270
  %273 = vset.pattern.permute.xlu0 1
  %274 = vperm.xlu0 %273, %v33
  %v275 = vpop.permute.xlu0 %274
  %277 = vset.pattern.permute.xlu0 1
  %278 = vperm.xlu0 %277, %v34
  %v279 = vpop.permute.xlu0 %278
  %281 = vset.pattern.permute.xlu0 1
  %282 = vperm.xlu0 %281, %v35
  %v283 = vpop.permute.xlu0 %282
  %285 = vset.pattern.permute.xlu0 1
  %286 = vperm.xlu0 %285, %v36
  %v287 = vpop.permute.xlu0 %286
  %289 = vset.pattern.permute.xlu0 1
  %290 = vperm.xlu0 %289, %v37
  %v291 = vpop.permute.xlu0 %290
  %293 = vset.pattern.permute.xlu0 1
  %294 = vperm.xlu0 %293, %v38
  %v295 = vpop.permute.xlu0 %294
  %297 = vset.pattern.permute.xlu0 1
  %298 = vperm.xlu0 %297, %v39
  %v299 = vpop.permute.xlu0 %298
  %301 = vset.pattern.permute.xlu0 1
  %302 = vperm.xlu0 %301, %v40
  %v303 = vpop.permute.xlu0 %302
  %305 = vset.pattern.permute.xlu0 1
  %306 = vperm.xlu0 %305, %v41
  %v307 = vpop.permute.xlu0 %306
  %309 = vset.pattern.permute.xlu0 1
  %310 = vperm.xlu0 %309, %v42
  %v311 = vpop.permute.xlu0 %310
  %313 = vset.pattern.permute.xlu0 1
  %314 = vperm.xlu0 %313, %v43
  %v315 = vpop.permute.xlu0 %314
  %317 = vset.pattern.permute.xlu0 1
  %318 = vperm.xlu0 %317, %v44
  %v319 = vpop.permute.xlu0 %318
  %v321 = vlaneseq
  %v322 = vshrl.u32 %v321, 7
  %v323 = vsub.s32 1, %v322
  %v324 = vrot.slane %v28, %v323
  %v325 = vmul.f32 %v259, %v324
  %v326 = vmul.f32 %v263, %v324
  %v327 = vmul.f32 %v267, %v324
  %v328 = vmul.f32 %v271, %v324
  %v329 = vmul.f32 %v275, %v324
  %v330 = vmul.f32 %v279, %v324
  %v331 = vmul.f32 %v283, %v324
  %v332 = vmul.f32 %v287, %v324
  %v333 = vmul.f32 %v291, %v324
  %v334 = vmul.f32 %v295, %v324
  %v335 = vmul.f32 %v299, %v324
  %v336 = vmul.f32 %v303, %v324
  %v337 = vmul.f32 %v307, %v324
  %v338 = vmul.f32 %v311, %v324
  %v339 = vmul.f32 %v315, %v324
  %v340 = vmul.f32 %v319, %v324
  %v341 = vadd.f32 %v241, %v325
  %v342 = vadd.f32 %v242, %v326
  %v343 = vadd.f32 %v243, %v327
  %v344 = vadd.f32 %v244, %v328
  %v345 = vadd.f32 %v245, %v329
  %v346 = vadd.f32 %v246, %v330
  %v347 = vadd.f32 %v247, %v331
  %v348 = vadd.f32 %v248, %v332
  %v349 = vadd.f32 %v249, %v333
  %v350 = vadd.f32 %v250, %v334
  %v351 = vadd.f32 %v251, %v335
  %v352 = vadd.f32 %v252, %v336
  %v353 = vadd.f32 %v253, %v337
  %v354 = vadd.f32 %v254, %v338
  %v355 = vadd.f32 %v255, %v339
  %v356 = vadd.f32 %v256, %v340
  %357 = vset.pattern.permute.xlu0 2
  %358 = vperm.xlu0 %357, %v29
  %v359 = vpop.permute.xlu0 %358
  %361 = vset.pattern.permute.xlu0 2
  %362 = vperm.xlu0 %361, %v30
  %v363 = vpop.permute.xlu0 %362
  %365 = vset.pattern.permute.xlu0 2
  %366 = vperm.xlu0 %365, %v31
  %v367 = vpop.permute.xlu0 %366
  %369 = vset.pattern.permute.xlu0 2
  %370 = vperm.xlu0 %369, %v32
  %v371 = vpop.permute.xlu0 %370
  %373 = vset.pattern.permute.xlu0 2
  %374 = vperm.xlu0 %373, %v33
  %v375 = vpop.permute.xlu0 %374
  %377 = vset.pattern.permute.xlu0 2
  %378 = vperm.xlu0 %377, %v34
  %v379 = vpop.permute.xlu0 %378
  %381 = vset.pattern.permute.xlu0 2
  %382 = vperm.xlu0 %381, %v35
  %v383 = vpop.permute.xlu0 %382
  %385 = vset.pattern.permute.xlu0 2
  %386 = vperm.xlu0 %385, %v36
  %v387 = vpop.permute.xlu0 %386
  %389 = vset.pattern.permute.xlu0 2
  %390 = vperm.xlu0 %389, %v37
  %v391 = vpop.permute.xlu0 %390
  %393 = vset.pattern.permute.xlu0 2
  %394 = vperm.xlu0 %393, %v38
  %v395 = vpop.permute.xlu0 %394
  %397 = vset.pattern.permute.xlu0 2
  %398 = vperm.xlu0 %397, %v39
  %v399 = vpop.permute.xlu0 %398
  %401 = vset.pattern.permute.xlu0 2
  %402 = vperm.xlu0 %401, %v40
  %v403 = vpop.permute.xlu0 %402
  %405 = vset.pattern.permute.xlu0 2
  %406 = vperm.xlu0 %405, %v41
  %v407 = vpop.permute.xlu0 %406
  %409 = vset.pattern.permute.xlu0 2
  %410 = vperm.xlu0 %409, %v42
  %v411 = vpop.permute.xlu0 %410
  %413 = vset.pattern.permute.xlu0 2
  %414 = vperm.xlu0 %413, %v43
  %v415 = vpop.permute.xlu0 %414
  %417 = vset.pattern.permute.xlu0 2
  %418 = vperm.xlu0 %417, %v44
  %v419 = vpop.permute.xlu0 %418
  %v421 = vlaneseq
  %v422 = vshrl.u32 %v421, 7
  %v423 = vsub.s32 2, %v422
  %v424 = vrot.slane %v28, %v423
  %v425 = vmul.f32 %v359, %v424
  %v426 = vmul.f32 %v363, %v424
  %v427 = vmul.f32 %v367, %v424
  %v428 = vmul.f32 %v371, %v424
  %v429 = vmul.f32 %v375, %v424
  %v430 = vmul.f32 %v379, %v424
  %v431 = vmul.f32 %v383, %v424
  %v432 = vmul.f32 %v387, %v424
  %v433 = vmul.f32 %v391, %v424
  %v434 = vmul.f32 %v395, %v424
  %v435 = vmul.f32 %v399, %v424
  %v436 = vmul.f32 %v403, %v424
  %v437 = vmul.f32 %v407, %v424
  %v438 = vmul.f32 %v411, %v424
  %v439 = vmul.f32 %v415, %v424
  %v440 = vmul.f32 %v419, %v424
  %v441 = vadd.f32 %v341, %v425
  %v442 = vadd.f32 %v342, %v426
  %v443 = vadd.f32 %v343, %v427
  %v444 = vadd.f32 %v344, %v428
  %v445 = vadd.f32 %v345, %v429
  %v446 = vadd.f32 %v346, %v430
  %v447 = vadd.f32 %v347, %v431
  %v448 = vadd.f32 %v348, %v432
  %v449 = vadd.f32 %v349, %v433
  %v450 = vadd.f32 %v350, %v434
  %v451 = vadd.f32 %v351, %v435
  %v452 = vadd.f32 %v352, %v436
  %v453 = vadd.f32 %v353, %v437
  %v454 = vadd.f32 %v354, %v438
  %v455 = vadd.f32 %v355, %v439
  %v456 = vadd.f32 %v356, %v440
  %457 = vset.pattern.permute.xlu0 3
  %458 = vperm.xlu0 %457, %v29
  %v459 = vpop.permute.xlu0 %458
  %461 = vset.pattern.permute.xlu0 3
  %462 = vperm.xlu0 %461, %v30
  %v463 = vpop.permute.xlu0 %462
  %465 = vset.pattern.permute.xlu0 3
  %466 = vperm.xlu0 %465, %v31
  %v467 = vpop.permute.xlu0 %466
  %469 = vset.pattern.permute.xlu0 3
  %470 = vperm.xlu0 %469, %v32
  %v471 = vpop.permute.xlu0 %470
  %473 = vset.pattern.permute.xlu0 3
  %474 = vperm.xlu0 %473, %v33
  %v475 = vpop.permute.xlu0 %474
  %477 = vset.pattern.permute.xlu0 3
  %478 = vperm.xlu0 %477, %v34
  %v479 = vpop.permute.xlu0 %478
  %481 = vset.pattern.permute.xlu0 3
  %482 = vperm.xlu0 %481, %v35
  %v483 = vpop.permute.xlu0 %482
  %485 = vset.pattern.permute.xlu0 3
  %486 = vperm.xlu0 %485, %v36
  %v487 = vpop.permute.xlu0 %486
  %489 = vset.pattern.permute.xlu0 3
  %490 = vperm.xlu0 %489, %v37
  %v491 = vpop.permute.xlu0 %490
  %493 = vset.pattern.permute.xlu0 3
  %494 = vperm.xlu0 %493, %v38
  %v495 = vpop.permute.xlu0 %494
  %497 = vset.pattern.permute.xlu0 3
  %498 = vperm.xlu0 %497, %v39
  %v499 = vpop.permute.xlu0 %498
  %501 = vset.pattern.permute.xlu0 3
  %502 = vperm.xlu0 %501, %v40
  %v503 = vpop.permute.xlu0 %502
  %505 = vset.pattern.permute.xlu0 3
  %506 = vperm.xlu0 %505, %v41
  %v507 = vpop.permute.xlu0 %506
  %509 = vset.pattern.permute.xlu0 3
  %510 = vperm.xlu0 %509, %v42
  %v511 = vpop.permute.xlu0 %510
  %513 = vset.pattern.permute.xlu0 3
  %514 = vperm.xlu0 %513, %v43
  %v515 = vpop.permute.xlu0 %514
  %517 = vset.pattern.permute.xlu0 3
  %518 = vperm.xlu0 %517, %v44
  %v519 = vpop.permute.xlu0 %518
  %v521 = vlaneseq
  %v522 = vshrl.u32 %v521, 7
  %v523 = vsub.s32 3, %v522
  %v524 = vrot.slane %v28, %v523
  %v525 = vmul.f32 %v459, %v524
  %v526 = vmul.f32 %v463, %v524
  %v527 = vmul.f32 %v467, %v524
  %v528 = vmul.f32 %v471, %v524
  %v529 = vmul.f32 %v475, %v524
  %v530 = vmul.f32 %v479, %v524
  %v531 = vmul.f32 %v483, %v524
  %v532 = vmul.f32 %v487, %v524
  %v533 = vmul.f32 %v491, %v524
  %v534 = vmul.f32 %v495, %v524
  %v535 = vmul.f32 %v499, %v524
  %v536 = vmul.f32 %v503, %v524
  %v537 = vmul.f32 %v507, %v524
  %v538 = vmul.f32 %v511, %v524
  %v539 = vmul.f32 %v515, %v524
  %v540 = vmul.f32 %v519, %v524
  %v541 = vadd.f32 %v441, %v525
  %v542 = vadd.f32 %v442, %v526
  %v543 = vadd.f32 %v443, %v527
  %v544 = vadd.f32 %v444, %v528
  %v545 = vadd.f32 %v445, %v529
  %v546 = vadd.f32 %v446, %v530
  %v547 = vadd.f32 %v447, %v531
  %v548 = vadd.f32 %v448, %v532
  %v549 = vadd.f32 %v449, %v533
  %v550 = vadd.f32 %v450, %v534
  %v551 = vadd.f32 %v451, %v535
  %v552 = vadd.f32 %v452, %v536
  %v553 = vadd.f32 %v453, %v537
  %v554 = vadd.f32 %v454, %v538
  %v555 = vadd.f32 %v455, %v539
  %v556 = vadd.f32 %v456, %v540
  %557 = vset.pattern.permute.xlu0 4
  %558 = vperm.xlu0 %557, %v29
  %v559 = vpop.permute.xlu0 %558
  %561 = vset.pattern.permute.xlu0 4
  %562 = vperm.xlu0 %561, %v30
  %v563 = vpop.permute.xlu0 %562
  %565 = vset.pattern.permute.xlu0 4
  %566 = vperm.xlu0 %565, %v31
  %v567 = vpop.permute.xlu0 %566
  %569 = vset.pattern.permute.xlu0 4
  %570 = vperm.xlu0 %569, %v32
  %v571 = vpop.permute.xlu0 %570
  %573 = vset.pattern.permute.xlu0 4
  %574 = vperm.xlu0 %573, %v33
  %v575 = vpop.permute.xlu0 %574
  %577 = vset.pattern.permute.xlu0 4
  %578 = vperm.xlu0 %577, %v34
  %v579 = vpop.permute.xlu0 %578
  %581 = vset.pattern.permute.xlu0 4
  %582 = vperm.xlu0 %581, %v35
  %v583 = vpop.permute.xlu0 %582
  %585 = vset.pattern.permute.xlu0 4
  %586 = vperm.xlu0 %585, %v36
  %v587 = vpop.permute.xlu0 %586
  %589 = vset.pattern.permute.xlu0 4
  %590 = vperm.xlu0 %589, %v37
  %v591 = vpop.permute.xlu0 %590
  %593 = vset.pattern.permute.xlu0 4
  %594 = vperm.xlu0 %593, %v38
  %v595 = vpop.permute.xlu0 %594
  %597 = vset.pattern.permute.xlu0 4
  %598 = vperm.xlu0 %597, %v39
  %v599 = vpop.permute.xlu0 %598
  %601 = vset.pattern.permute.xlu0 4
  %602 = vperm.xlu0 %601, %v40
  %v603 = vpop.permute.xlu0 %602
  %605 = vset.pattern.permute.xlu0 4
  %606 = vperm.xlu0 %605, %v41
  %v607 = vpop.permute.xlu0 %606
  %609 = vset.pattern.permute.xlu0 4
  %610 = vperm.xlu0 %609, %v42
  %v611 = vpop.permute.xlu0 %610
  %613 = vset.pattern.permute.xlu0 4
  %614 = vperm.xlu0 %613, %v43
  %v615 = vpop.permute.xlu0 %614
  %617 = vset.pattern.permute.xlu0 4
  %618 = vperm.xlu0 %617, %v44
  %v619 = vpop.permute.xlu0 %618
  %v621 = vlaneseq
  %v622 = vshrl.u32 %v621, 7
  %v623 = vsub.s32 4, %v622
  %v624 = vrot.slane %v28, %v623
  %v625 = vmul.f32 %v559, %v624
  %v626 = vmul.f32 %v563, %v624
  %v627 = vmul.f32 %v567, %v624
  %v628 = vmul.f32 %v571, %v624
  %v629 = vmul.f32 %v575, %v624
  %v630 = vmul.f32 %v579, %v624
  %v631 = vmul.f32 %v583, %v624
  %v632 = vmul.f32 %v587, %v624
  %v633 = vmul.f32 %v591, %v624
  %v634 = vmul.f32 %v595, %v624
  %v635 = vmul.f32 %v599, %v624
  %v636 = vmul.f32 %v603, %v624
  %v637 = vmul.f32 %v607, %v624
  %v638 = vmul.f32 %v611, %v624
  %v639 = vmul.f32 %v615, %v624
  %v640 = vmul.f32 %v619, %v624
  %v641 = vadd.f32 %v541, %v625
  %v642 = vadd.f32 %v542, %v626
  %v643 = vadd.f32 %v543, %v627
  %v644 = vadd.f32 %v544, %v628
  %v645 = vadd.f32 %v545, %v629
  %v646 = vadd.f32 %v546, %v630
  %v647 = vadd.f32 %v547, %v631
  %v648 = vadd.f32 %v548, %v632
  %v649 = vadd.f32 %v549, %v633
  %v650 = vadd.f32 %v550, %v634
  %v651 = vadd.f32 %v551, %v635
  %v652 = vadd.f32 %v552, %v636
  %v653 = vadd.f32 %v553, %v637
  %v654 = vadd.f32 %v554, %v638
  %v655 = vadd.f32 %v555, %v639
  %v656 = vadd.f32 %v556, %v640
  %657 = vset.pattern.permute.xlu0 5
  %658 = vperm.xlu0 %657, %v29
  %v659 = vpop.permute.xlu0 %658
  %661 = vset.pattern.permute.xlu0 5
  %662 = vperm.xlu0 %661, %v30
  %v663 = vpop.permute.xlu0 %662
  %665 = vset.pattern.permute.xlu0 5
  %666 = vperm.xlu0 %665, %v31
  %v667 = vpop.permute.xlu0 %666
  %669 = vset.pattern.permute.xlu0 5
  %670 = vperm.xlu0 %669, %v32
  %v671 = vpop.permute.xlu0 %670
  %673 = vset.pattern.permute.xlu0 5
  %674 = vperm.xlu0 %673, %v33
  %v675 = vpop.permute.xlu0 %674
  %677 = vset.pattern.permute.xlu0 5
  %678 = vperm.xlu0 %677, %v34
  %v679 = vpop.permute.xlu0 %678
  %681 = vset.pattern.permute.xlu0 5
  %682 = vperm.xlu0 %681, %v35
  %v683 = vpop.permute.xlu0 %682
  %685 = vset.pattern.permute.xlu0 5
  %686 = vperm.xlu0 %685, %v36
  %v687 = vpop.permute.xlu0 %686
  %689 = vset.pattern.permute.xlu0 5
  %690 = vperm.xlu0 %689, %v37
  %v691 = vpop.permute.xlu0 %690
  %693 = vset.pattern.permute.xlu0 5
  %694 = vperm.xlu0 %693, %v38
  %v695 = vpop.permute.xlu0 %694
  %697 = vset.pattern.permute.xlu0 5
  %698 = vperm.xlu0 %697, %v39
  %v699 = vpop.permute.xlu0 %698
  %701 = vset.pattern.permute.xlu0 5
  %702 = vperm.xlu0 %701, %v40
  %v703 = vpop.permute.xlu0 %702
  %705 = vset.pattern.permute.xlu0 5
  %706 = vperm.xlu0 %705, %v41
  %v707 = vpop.permute.xlu0 %706
  %709 = vset.pattern.permute.xlu0 5
  %710 = vperm.xlu0 %709, %v42
  %v711 = vpop.permute.xlu0 %710
  %713 = vset.pattern.permute.xlu0 5
  %714 = vperm.xlu0 %713, %v43
  %v715 = vpop.permute.xlu0 %714
  %717 = vset.pattern.permute.xlu0 5
  %718 = vperm.xlu0 %717, %v44
  %v719 = vpop.permute.xlu0 %718
  %v721 = vlaneseq
  %v722 = vshrl.u32 %v721, 7
  %v723 = vsub.s32 5, %v722
  %v724 = vrot.slane %v28, %v723
  %v725 = vmul.f32 %v659, %v724
  %v726 = vmul.f32 %v663, %v724
  %v727 = vmul.f32 %v667, %v724
  %v728 = vmul.f32 %v671, %v724
  %v729 = vmul.f32 %v675, %v724
  %v730 = vmul.f32 %v679, %v724
  %v731 = vmul.f32 %v683, %v724
  %v732 = vmul.f32 %v687, %v724
  %v733 = vmul.f32 %v691, %v724
  %v734 = vmul.f32 %v695, %v724
  %v735 = vmul.f32 %v699, %v724
  %v736 = vmul.f32 %v703, %v724
  %v737 = vmul.f32 %v707, %v724
  %v738 = vmul.f32 %v711, %v724
  %v739 = vmul.f32 %v715, %v724
  %v740 = vmul.f32 %v719, %v724
  %v741 = vadd.f32 %v641, %v725
  %v742 = vadd.f32 %v642, %v726
  %v743 = vadd.f32 %v643, %v727
  %v744 = vadd.f32 %v644, %v728
  %v745 = vadd.f32 %v645, %v729
  %v746 = vadd.f32 %v646, %v730
  %v747 = vadd.f32 %v647, %v731
  %v748 = vadd.f32 %v648, %v732
  %v749 = vadd.f32 %v649, %v733
  %v750 = vadd.f32 %v650, %v734
  %v751 = vadd.f32 %v651, %v735
  %v752 = vadd.f32 %v652, %v736
  %v753 = vadd.f32 %v653, %v737
  %v754 = vadd.f32 %v654, %v738
  %v755 = vadd.f32 %v655, %v739
  %v756 = vadd.f32 %v656, %v740
  %757 = vset.pattern.permute.xlu0 6
  %758 = vperm.xlu0 %757, %v29
  %v759 = vpop.permute.xlu0 %758
  %761 = vset.pattern.permute.xlu0 6
  %762 = vperm.xlu0 %761, %v30
  %v763 = vpop.permute.xlu0 %762
  %765 = vset.pattern.permute.xlu0 6
  %766 = vperm.xlu0 %765, %v31
  %v767 = vpop.permute.xlu0 %766
  %769 = vset.pattern.permute.xlu0 6
  %770 = vperm.xlu0 %769, %v32
  %v771 = vpop.permute.xlu0 %770
  %773 = vset.pattern.permute.xlu0 6
  %774 = vperm.xlu0 %773, %v33
  %v775 = vpop.permute.xlu0 %774
  %777 = vset.pattern.permute.xlu0 6
  %778 = vperm.xlu0 %777, %v34
  %v779 = vpop.permute.xlu0 %778
  %781 = vset.pattern.permute.xlu0 6
  %782 = vperm.xlu0 %781, %v35
  %v783 = vpop.permute.xlu0 %782
  %785 = vset.pattern.permute.xlu0 6
  %786 = vperm.xlu0 %785, %v36
  %v787 = vpop.permute.xlu0 %786
  %789 = vset.pattern.permute.xlu0 6
  %790 = vperm.xlu0 %789, %v37
  %v791 = vpop.permute.xlu0 %790
  %793 = vset.pattern.permute.xlu0 6
  %794 = vperm.xlu0 %793, %v38
  %v795 = vpop.permute.xlu0 %794
  %797 = vset.pattern.permute.xlu0 6
  %798 = vperm.xlu0 %797, %v39
  %v799 = vpop.permute.xlu0 %798
  %801 = vset.pattern.permute.xlu0 6
  %802 = vperm.xlu0 %801, %v40
  %v803 = vpop.permute.xlu0 %802
  %805 = vset.pattern.permute.xlu0 6
  %806 = vperm.xlu0 %805, %v41
  %v807 = vpop.permute.xlu0 %806
  %809 = vset.pattern.permute.xlu0 6
  %810 = vperm.xlu0 %809, %v42
  %v811 = vpop.permute.xlu0 %810
  %813 = vset.pattern.permute.xlu0 6
  %814 = vperm.xlu0 %813, %v43
  %v815 = vpop.permute.xlu0 %814
  %817 = vset.pattern.permute.xlu0 6
  %818 = vperm.xlu0 %817, %v44
  %v819 = vpop.permute.xlu0 %818
  %v821 = vlaneseq
  %v822 = vshrl.u32 %v821, 7
  %v823 = vsub.s32 6, %v822
  %v824 = vrot.slane %v28, %v823
  %v825 = vmul.f32 %v759, %v824
  %v826 = vmul.f32 %v763, %v824
  %v827 = vmul.f32 %v767, %v824
  %v828 = vmul.f32 %v771, %v824
  %v829 = vmul.f32 %v775, %v824
  %v830 = vmul.f32 %v779, %v824
  %v831 = vmul.f32 %v783, %v824
  %v832 = vmul.f32 %v787, %v824
  %v833 = vmul.f32 %v791, %v824
  %v834 = vmul.f32 %v795, %v824
  %v835 = vmul.f32 %v799, %v824
  %v836 = vmul.f32 %v803, %v824
  %v837 = vmul.f32 %v807, %v824
  %v838 = vmul.f32 %v811, %v824
  %v839 = vmul.f32 %v815, %v824
  %v840 = vmul.f32 %v819, %v824
  %v841 = vadd.f32 %v741, %v825
  %v842 = vadd.f32 %v742, %v826
  %v843 = vadd.f32 %v743, %v827
  %v844 = vadd.f32 %v744, %v828
  %v845 = vadd.f32 %v745, %v829
  %v846 = vadd.f32 %v746, %v830
  %v847 = vadd.f32 %v747, %v831
  %v848 = vadd.f32 %v748, %v832
  %v849 = vadd.f32 %v749, %v833
  %v850 = vadd.f32 %v750, %v834
  %v851 = vadd.f32 %v751, %v835
  %v852 = vadd.f32 %v752, %v836
  %v853 = vadd.f32 %v753, %v837
  %v854 = vadd.f32 %v754, %v838
  %v855 = vadd.f32 %v755, %v839
  %v856 = vadd.f32 %v756, %v840
  %857 = vset.pattern.permute.xlu0 7
  %858 = vperm.xlu0 %857, %v29
  %v859 = vpop.permute.xlu0 %858
  %861 = vset.pattern.permute.xlu0 7
  %862 = vperm.xlu0 %861, %v30
  %v863 = vpop.permute.xlu0 %862
  %865 = vset.pattern.permute.xlu0 7
  %866 = vperm.xlu0 %865, %v31
  %v867 = vpop.permute.xlu0 %866
  %869 = vset.pattern.permute.xlu0 7
  %870 = vperm.xlu0 %869, %v32
  %v871 = vpop.permute.xlu0 %870
  %873 = vset.pattern.permute.xlu0 7
  %874 = vperm.xlu0 %873, %v33
  %v875 = vpop.permute.xlu0 %874
  %877 = vset.pattern.permute.xlu0 7
  %878 = vperm.xlu0 %877, %v34
  %v879 = vpop.permute.xlu0 %878
  %881 = vset.pattern.permute.xlu0 7
  %882 = vperm.xlu0 %881, %v35
  %v883 = vpop.permute.xlu0 %882
  %885 = vset.pattern.permute.xlu0 7
  %886 = vperm.xlu0 %885, %v36
  %v887 = vpop.permute.xlu0 %886
  %889 = vset.pattern.permute.xlu0 7
  %890 = vperm.xlu0 %889, %v37
  %v891 = vpop.permute.xlu0 %890
  %893 = vset.pattern.permute.xlu0 7
  %894 = vperm.xlu0 %893, %v38
  %v895 = vpop.permute.xlu0 %894
  %897 = vset.pattern.permute.xlu0 7
  %898 = vperm.xlu0 %897, %v39
  %v899 = vpop.permute.xlu0 %898
  %901 = vset.pattern.permute.xlu0 7
  %902 = vperm.xlu0 %901, %v40
  %v903 = vpop.permute.xlu0 %902
  %905 = vset.pattern.permute.xlu0 7
  %906 = vperm.xlu0 %905, %v41
  %v907 = vpop.permute.xlu0 %906
  %909 = vset.pattern.permute.xlu0 7
  %910 = vperm.xlu0 %909, %v42
  %v911 = vpop.permute.xlu0 %910
  %913 = vset.pattern.permute.xlu0 7
  %914 = vperm.xlu0 %913, %v43
  %v915 = vpop.permute.xlu0 %914
  %917 = vset.pattern.permute.xlu0 7
  %918 = vperm.xlu0 %917, %v44
  %v919 = vpop.permute.xlu0 %918
  %v921 = vlaneseq
  %v922 = vshrl.u32 %v921, 7
  %v923 = vsub.s32 7, %v922
  %v924 = vrot.slane %v28, %v923
  %v925 = vmul.f32 %v859, %v924
  %v926 = vmul.f32 %v863, %v924
  %v927 = vmul.f32 %v867, %v924
  %v928 = vmul.f32 %v871, %v924
  %v929 = vmul.f32 %v875, %v924
  %v930 = vmul.f32 %v879, %v924
  %v931 = vmul.f32 %v883, %v924
  %v932 = vmul.f32 %v887, %v924
  %v933 = vmul.f32 %v891, %v924
  %v934 = vmul.f32 %v895, %v924
  %v935 = vmul.f32 %v899, %v924
  %v936 = vmul.f32 %v903, %v924
  %v937 = vmul.f32 %v907, %v924
  %v938 = vmul.f32 %v911, %v924
  %v939 = vmul.f32 %v915, %v924
  %v940 = vmul.f32 %v919, %v924
  %v941 = vadd.f32 %v841, %v925
  %v942 = vadd.f32 %v842, %v926
  %v943 = vadd.f32 %v843, %v927
  %v944 = vadd.f32 %v844, %v928
  %v945 = vadd.f32 %v845, %v929
  %v946 = vadd.f32 %v846, %v930
  %v947 = vadd.f32 %v847, %v931
  %v948 = vadd.f32 %v848, %v932
  %v949 = vadd.f32 %v849, %v933
  %v950 = vadd.f32 %v850, %v934
  %v951 = vadd.f32 %v851, %v935
  %v952 = vadd.f32 %v852, %v936
  %v953 = vadd.f32 %v853, %v937
  %v954 = vadd.f32 %v854, %v938
  %v955 = vadd.f32 %v855, %v939
  %v956 = vadd.f32 %v856, %v940
  %v957 = vmax.f32 %v941, 0.0
  %v958 = vmax.f32 %v942, 0.0
  %v959 = vmax.f32 %v943, 0.0
  %v960 = vmax.f32 %v944, 0.0
  %v961 = vmax.f32 %v945, 0.0
  %v962 = vmax.f32 %v946, 0.0
  %v963 = vmax.f32 %v947, 0.0
  %v964 = vmax.f32 %v948, 0.0
  %v965 = vmax.f32 %v949, 0.0
  %v966 = vmax.f32 %v950, 0.0
  %v967 = vmax.f32 %v951, 0.0
  %v968 = vmax.f32 %v952, 0.0
  %v969 = vmax.f32 %v953, 0.0
  %v970 = vmax.f32 %v954, 0.0
  %v971 = vmax.f32 %v955, 0.0
  %v972 = vmax.f32 %v956, 0.0
  %v973 = vld [vmem:[%s3] sm:$0xff]
  %v974 = vld [vmem:[%s3 + $0x8] sm:$0xff]
  %v975 = vld [vmem:[%s3 + $0x10] sm:$0xff]
  %v976 = vld [vmem:[%s3 + $0x18] sm:$0xff]
  %v977 = vld [vmem:[%s3 + $0x20] sm:$0xff]
  %v978 = vld [vmem:[%s3 + $0x28] sm:$0xff]
  %v979 = vld [vmem:[%s3 + $0x30] sm:$0xff]
  %v980 = vld [vmem:[%s3 + $0x38] sm:$0xff]
  %v981 = vld [vmem:[%s3 + $0x40] sm:$0xff]
  %v982 = vld [vmem:[%s3 + $0x48] sm:$0xff]
  %v983 = vld [vmem:[%s3 + $0x50] sm:$0xff]
  %v984 = vld [vmem:[%s3 + $0x58] sm:$0xff]
  %v985 = vld [vmem:[%s3 + $0x60] sm:$0xff]
  %v986 = vld [vmem:[%s3 + $0x68] sm:$0xff]
  %v987 = vld [vmem:[%s3 + $0x70] sm:$0xff]
  %v988 = vld [vmem:[%s3 + $0x78] sm:$0xff]
  %v989 = vld [vmem:[%s3 + $0x80] sm:$0xff]
  %v990 = vld [vmem:[%s3 + $0x88] sm:$0xff]
  %v991 = vld [vmem:[%s3 + $0x90] sm:$0xff]
  %v992 = vld [vmem:[%s3 + $0x98] sm:$0xff]
  %v993 = vld [vmem:[%s3 + $0xa0] sm:$0xff]
  %v994 = vld [vmem:[%s3 + $0xa8] sm:$0xff]
  %v995 = vld [vmem:[%s3 + $0xb0] sm:$0xff]
  %v996 = vld [vmem:[%s3 + $0xb8] sm:$0xff]
  %v997 = vld [vmem:[%s3 + $0xc0] sm:$0xff]
  %v998 = vld [vmem:[%s3 + $0xc8] sm:$0xff]
  %v999 = vld [vmem:[%s3 + $0xd0] sm:$0xff]
  %v1000 = vld [vmem:[%s3 + $0xd8] sm:$0xff]
  %v1001 = vld [vmem:[%s3 + $0xe0] sm:$0xff]
  %v1002 = vld [vmem:[%s3 + $0xe8] sm:$0xff]
  %v1003 = vld [vmem:[%s3 + $0xf0] sm:$0xff]
  %v1004 = vld [vmem:[%s3 + $0xf8] sm:$0xff]
  %v1005 = vld [vmem:[%s4] sm:$0xff]
  %v1006 = vld [vmem:[%s4 + $0x8] sm:$0xff]
  %v1007 = vld [vmem:[%s4 + $0x10] sm:$0xff]
  %v1008 = vld [vmem:[%s4 + $0x18] sm:$0xff]
  %v1009 = vld [vmem:[%s4 + $0x20] sm:$0xff]
  %v1010 = vld [vmem:[%s4 + $0x28] sm:$0xff]
  %v1011 = vld [vmem:[%s4 + $0x30] sm:$0xff]
  %v1012 = vld [vmem:[%s4 + $0x38] sm:$0xff]
  %v1013 = vld [vmem:[%s4 + $0x40] sm:$0xff]
  %v1014 = vld [vmem:[%s4 + $0x48] sm:$0xff]
  %v1015 = vld [vmem:[%s4 + $0x50] sm:$0xff]
  %v1016 = vld [vmem:[%s4 + $0x58] sm:$0xff]
  %v1017 = vld [vmem:[%s4 + $0x60] sm:$0xff]
  %v1018 = vld [vmem:[%s4 + $0x68] sm:$0xff]
  %v1019 = vld [vmem:[%s4 + $0x70] sm:$0xff]
  %v1020 = vld [vmem:[%s4 + $0x78] sm:$0xff]
  %v1021 = vld [vmem:[%s4 + $0x80] sm:$0xff]
  %v1022 = vld [vmem:[%s4 + $0x88] sm:$0xff]
  %v1023 = vld [vmem:[%s4 + $0x90] sm:$0xff]
  %v1024 = vld [vmem:[%s4 + $0x98] sm:$0xff]
  %v1025 = vld [vmem:[%s4 + $0xa0] sm:$0xff]
  %v1026 = vld [vmem:[%s4 + $0xa8] sm:$0xff]
  %v1027 = vld [vmem:[%s4 + $0xb0] sm:$0xff]
  %v1028 = vld [vmem:[%s4 + $0xb8] sm:$0xff]
  %v1029 = vld [vmem:[%s4 + $0xc0] sm:$0xff]
  %v1030 = vld [vmem:[%s4 + $0xc8] sm:$0xff]
  %v1031 = vld [vmem:[%s4 + $0xd0] sm:$0xff]
  %v1032 = vld [vmem:[%s4 + $0xd8] sm:$0xff]
  %v1033 = vld [vmem:[%s4 + $0xe0] sm:$0xff]
  %v1034 = vld [vmem:[%s4 + $0xe8] sm:$0xff]
  %v1035 = vld [vmem:[%s4 + $0xf0] sm:$0xff]
  %v1036 = vld [vmem:[%s4 + $0xf8] sm:$0xff]
  %1038 = vset.pattern.permute.xlu0 0
  %1039 = vperm.xlu0 %1038, %v1005
  %v1040 = vpop.permute.xlu0 %1039
  %1043 = vset.pattern.permute.xlu0 0
  %1044 = vperm.xlu0 %1043, %v1006
  %v1045 = vpop.permute.xlu0 %1044
  %1048 = vset.pattern.permute.xlu0 0
  %1049 = vperm.xlu0 %1048, %v1007
  %v1050 = vpop.permute.xlu0 %1049
  %1053 = vset.pattern.permute.xlu0 0
  %1054 = vperm.xlu0 %1053, %v1008
  %v1055 = vpop.permute.xlu0 %1054
  %1058 = vset.pattern.permute.xlu0 0
  %1059 = vperm.xlu0 %1058, %v1009
  %v1060 = vpop.permute.xlu0 %1059
  %1063 = vset.pattern.permute.xlu0 0
  %1064 = vperm.xlu0 %1063, %v1010
  %v1065 = vpop.permute.xlu0 %1064
  %1068 = vset.pattern.permute.xlu0 0
  %1069 = vperm.xlu0 %1068, %v1011
  %v1070 = vpop.permute.xlu0 %1069
  %1073 = vset.pattern.permute.xlu0 0
  %1074 = vperm.xlu0 %1073, %v1012
  %v1075 = vpop.permute.xlu0 %1074
  %1078 = vset.pattern.permute.xlu0 0
  %1079 = vperm.xlu0 %1078, %v1013
  %v1080 = vpop.permute.xlu0 %1079
  %1083 = vset.pattern.permute.xlu0 0
  %1084 = vperm.xlu0 %1083, %v1014
  %v1085 = vpop.permute.xlu0 %1084
  %1088 = vset.pattern.permute.xlu0 0
  %1089 = vperm.xlu0 %1088, %v1015
  %v1090 = vpop.permute.xlu0 %1089
  %1093 = vset.pattern.permute.xlu0 0
  %1094 = vperm.xlu0 %1093, %v1016
  %v1095 = vpop.permute.xlu0 %1094
  %1098 = vset.pattern.permute.xlu0 0
  %1099 = vperm.xlu0 %1098, %v1017
  %v1100 = vpop.permute.xlu0 %1099
  %1103 = vset.pattern.permute.xlu0 0
  %1104 = vperm.xlu0 %1103, %v1018
  %v1105 = vpop.permute.xlu0 %1104
  %1108 = vset.pattern.permute.xlu0 0
  %1109 = vperm.xlu0 %1108, %v1019
  %v1110 = vpop.permute.xlu0 %1109
  %1113 = vset.pattern.permute.xlu0 0
  %1114 = vperm.xlu0 %1113, %v1020
  %v1115 = vpop.permute.xlu0 %1114
  %1118 = vset.pattern.permute.xlu0 0
  %1119 = vperm.xlu0 %1118, %v1021
  %v1120 = vpop.permute.xlu0 %1119
  %1123 = vset.pattern.permute.xlu0 0
  %1124 = vperm.xlu0 %1123, %v1022
  %v1125 = vpop.permute.xlu0 %1124
  %1128 = vset.pattern.permute.xlu0 0
  %1129 = vperm.xlu0 %1128, %v1023
  %v1130 = vpop.permute.xlu0 %1129
  %1133 = vset.pattern.permute.xlu0 0
  %1134 = vperm.xlu0 %1133, %v1024
  %v1135 = vpop.permute.xlu0 %1134
  %1138 = vset.pattern.permute.xlu0 0
  %1139 = vperm.xlu0 %1138, %v1025
  %v1140 = vpop.permute.xlu0 %1139
  %1143 = vset.pattern.permute.xlu0 0
  %1144 = vperm.xlu0 %1143, %v1026
  %v1145 = vpop.permute.xlu0 %1144
  %1148 = vset.pattern.permute.xlu0 0
  %1149 = vperm.xlu0 %1148, %v1027
  %v1150 = vpop.permute.xlu0 %1149
  %1153 = vset.pattern.permute.xlu0 0
  %1154 = vperm.xlu0 %1153, %v1028
  %v1155 = vpop.permute.xlu0 %1154
  %1158 = vset.pattern.permute.xlu0 0
  %1159 = vperm.xlu0 %1158, %v1029
  %v1160 = vpop.permute.xlu0 %1159
  %1163 = vset.pattern.permute.xlu0 0
  %1164 = vperm.xlu0 %1163, %v1030
  %v1165 = vpop.permute.xlu0 %1164
  %1168 = vset.pattern.permute.xlu0 0
  %1169 = vperm.xlu0 %1168, %v1031
  %v1170 = vpop.permute.xlu0 %1169
  %1173 = vset.pattern.permute.xlu0 0
  %1174 = vperm.xlu0 %1173, %v1032
  %v1175 = vpop.permute.xlu0 %1174
  %1178 = vset.pattern.permute.xlu0 0
  %1179 = vperm.xlu0 %1178, %v1033
  %v1180 = vpop.permute.xlu0 %1179
  %1183 = vset.pattern.permute.xlu0 0
  %1184 = vperm.xlu0 %1183, %v1034
  %v1185 = vpop.permute.xlu0 %1184
  %1188 = vset.pattern.permute.xlu0 0
  %1189 = vperm.xlu0 %1188, %v1035
  %v1190 = vpop.permute.xlu0 %1189
  %1193 = vset.pattern.permute.xlu0 0
  %1194 = vperm.xlu0 %1193, %v1036
  %v1195 = vpop.permute.xlu0 %1194
  %1197 = vmatprep.subr.mxu0 0.0
  %1198 = vmatpush1.msra.mxu0 %v972
  %1199 = vmatprep.subr.mxu0 0.0
  %1200 = vmatpush1.msra.mxu0 %v971
  %1201 = vmatprep.subr.mxu0 0.0
  %1202 = vmatpush1.msra.mxu0 %v970
  %1203 = vmatprep.subr.mxu0 0.0
  %1204 = vmatpush1.msra.mxu0 %v969
  %1205 = vmatprep.subr.mxu0 0.0
  %1206 = vmatpush1.msra.mxu0 %v968
  %1207 = vmatprep.subr.mxu0 0.0
  %1208 = vmatpush1.msra.mxu0 %v967
  %1209 = vmatprep.subr.mxu0 0.0
  %1210 = vmatpush1.msra.mxu0 %v966
  %1211 = vmatprep.subr.mxu0 0.0
  %1212 = vmatpush1.msra.mxu0 %v965
  %1213 = vmatprep.subr.mxu0 0.0
  %1214 = vmatpush1.msra.mxu0 %v964
  %1215 = vmatprep.subr.mxu0 0.0
  %1216 = vmatpush1.msra.mxu0 %v963
  %1217 = vmatprep.subr.mxu0 0.0
  %1218 = vmatpush1.msra.mxu0 %v962
  %1219 = vmatprep.subr.mxu0 0.0
  %1220 = vmatpush1.msra.mxu0 %v961
  %1221 = vmatprep.subr.mxu0 0.0
  %1222 = vmatpush1.msra.mxu0 %v960
  %1223 = vmatprep.subr.mxu0 0.0
  %1224 = vmatpush1.msra.mxu0 %v959
  %1225 = vmatprep.subr.mxu0 0.0
  %1226 = vmatpush1.msra.mxu0 %v958
  %1227 = vmatprep.subr.mxu0 0.0
  %1228 = vmatpush1.msra.mxu0 %v957
  %1229 = vmatprep.subr.mxu0 0.0
  %1230 = vmatpush2.msra.mxu0 0.0
  %1231 = vmatprep.subr.mxu0 0.0
  %1232 = vmatpush2.msra.mxu0 0.0
  %1233 = vmatprep.subr.mxu0 0.0
  %1234 = vmatpush2.msra.mxu0 0.0
  %1235 = vmatprep.subr.mxu0 0.0
  %1236 = vmatpush2.msra.mxu0 0.0
  %1237 = vmatprep.subr.mxu0 0.0
  %1238 = vmatpush2.msra.mxu0 0.0
  %1239 = vmatprep.subr.mxu0 0.0
  %1240 = vmatpush2.msra.mxu0 0.0
  %1241 = vmatprep.subr.mxu0 0.0
  %1242 = vmatpush2.msra.mxu0 0.0
  %1243 = vmatprep.subr.mxu0 0.0
  %1244 = vmatpush2.msra.mxu0 0.0
  %1245 = vmatprep.subr.mxu0 0.0
  %1246 = vmatpush2.msra.mxu0 0.0
  %1247 = vmatprep.subr.mxu0 0.0
  %1248 = vmatpush2.msra.mxu0 0.0
  %1249 = vmatprep.subr.mxu0 0.0
  %1250 = vmatpush2.msra.mxu0 0.0
  %1251 = vmatprep.subr.mxu0 0.0
  %1252 = vmatpush2.msra.mxu0 0.0
  %1253 = vmatprep.subr.mxu0 0.0
  %1254 = vmatpush2.msra.mxu0 0.0
  %1255 = vmatprep.subr.mxu0 0.0
  %1256 = vmatpush2.msra.mxu0 0.0
  %1257 = vmatprep.subr.mxu0 0.0
  %1258 = vmatpush2.msra.mxu0 0.0
  %1259 = vmatprep.subr.mxu0 0.0
  %1260 = vmatpush2.msra.mxu0 0.0
  %1261 = vmatprep.mubr.f32.mxu0 0.0
  %1262 = vmatmul.mubr.f32.gmra.mxu0 %v973
  %v1263 = vpop.f32.mrf.mxu0
  %v1264 = vadd.f32 %v1040, %v1263
  %v1265 = vpop.f32.mrf.mxu0
  %1266 = vmatprep.mubr.f32.mxu0 0.0
  %1267 = vmatmul.mubr.f32.gmra.mxu0 %v974
  %v1268 = vpop.f32.mrf.mxu0
  %v1269 = vadd.f32 %v1045, %v1268
  %v1270 = vpop.f32.mrf.mxu0
  %1271 = vmatprep.mubr.f32.mxu0 0.0
  %1272 = vmatmul.mubr.f32.gmra.mxu0 %v975
  %v1273 = vpop.f32.mrf.mxu0
  %v1274 = vadd.f32 %v1050, %v1273
  %v1275 = vpop.f32.mrf.mxu0
  %1276 = vmatprep.mubr.f32.mxu0 0.0
  %1277 = vmatmul.mubr.f32.gmra.mxu0 %v976
  %v1278 = vpop.f32.mrf.mxu0
  %v1279 = vadd.f32 %v1055, %v1278
  %v1280 = vpop.f32.mrf.mxu0
  %1281 = vmatprep.mubr.f32.mxu0 0.0
  %1282 = vmatmul.mubr.f32.gmra.mxu0 %v977
  %v1283 = vpop.f32.mrf.mxu0
  %v1284 = vadd.f32 %v1060, %v1283
  %v1285 = vpop.f32.mrf.mxu0
  %1286 = vmatprep.mubr.f32.mxu0 0.0
  %1287 = vmatmul.mubr.f32.gmra.mxu0 %v978
  %v1288 = vpop.f32.mrf.mxu0
  %v1289 = vadd.f32 %v1065, %v1288
  %v1290 = vpop.f32.mrf.mxu0
  %1291 = vmatprep.mubr.f32.mxu0 0.0
  %1292 = vmatmul.mubr.f32.gmra.mxu0 %v979
  %v1293 = vpop.f32.mrf.mxu0
  %v1294 = vadd.f32 %v1070, %v1293
  %v1295 = vpop.f32.mrf.mxu0
  %1296 = vmatprep.mubr.f32.mxu0 0.0
  %1297 = vmatmul.mubr.f32.gmra.mxu0 %v980
  %v1298 = vpop.f32.mrf.mxu0
  %v1299 = vadd.f32 %v1075, %v1298
  %v1300 = vpop.f32.mrf.mxu0
  %1301 = vmatprep.mubr.f32.mxu0 0.0
  %1302 = vmatmul.mubr.f32.gmra.mxu0 %v981
  %v1303 = vpop.f32.mrf.mxu0
  %v1304 = vadd.f32 %v1080, %v1303
  %v1305 = vpop.f32.mrf.mxu0
  %1306 = vmatprep.mubr.f32.mxu0 0.0
  %1307 = vmatmul.mubr.f32.gmra.mxu0 %v982
  %v1308 = vpop.f32.mrf.mxu0
  %v1309 = vadd.f32 %v1085, %v1308
  %v1310 = vpop.f32.mrf.mxu0
  %1311 = vmatprep.mubr.f32.mxu0 0.0
  %1312 = vmatmul.mubr.f32.gmra.mxu0 %v983
  %v1313 = vpop.f32.mrf.mxu0
  %v1314 = vadd.f32 %v1090, %v1313
  %v1315 = vpop.f32.mrf.mxu0
  %1316 = vmatprep.mubr.f32.mxu0 0.0
  %1317 = vmatmul.mubr.f32.gmra.mxu0 %v984
  %v1318 = vpop.f32.mrf.mxu0
  %v1319 = vadd.f32 %v1095, %v1318
  %v1320 = vpop.f32.mrf.mxu0
  %1321 = vmatprep.mubr.f32.mxu0 0.0
  %1322 = vmatmul.mubr.f32.gmra.mxu0 %v985
  %v1323 = vpop.f32.mrf.mxu0
  %v1324 = vadd.f32 %v1100, %v1323
  %v1325 = vpop.f32.mrf.mxu0
  %1326 = vmatprep.mubr.f32.mxu0 0.0
  %1327 = vmatmul.mubr.f32.gmra.mxu0 %v986
  %v1328 = vpop.f32.mrf.mxu0
  %v1329 = vadd.f32 %v1105, %v1328
  %v1330 = vpop.f32.mrf.mxu0
  %1331 = vmatprep.mubr.f32.mxu0 0.0
  %1332 = vmatmul.mubr.f32.gmra.mxu0 %v987
  %v1333 = vpop.f32.mrf.mxu0
  %v1334 = vadd.f32 %v1110, %v1333
  %v1335 = vpop.f32.mrf.mxu0
  %1336 = vmatprep.mubr.f32.mxu0 0.0
  %1337 = vmatmul.mubr.f32.gmra.mxu0 %v988
  %v1338 = vpop.f32.mrf.mxu0
  %v1339 = vadd.f32 %v1115, %v1338
  %v1340 = vpop.f32.mrf.mxu0
  %1341 = vmatprep.mubr.f32.mxu0 0.0
  %1342 = vmatmul.mubr.f32.gmra.mxu0 %v989
  %v1343 = vpop.f32.mrf.mxu0
  %v1344 = vadd.f32 %v1120, %v1343
  %v1345 = vpop.f32.mrf.mxu0
  %1346 = vmatprep.mubr.f32.mxu0 0.0
  %1347 = vmatmul.mubr.f32.gmra.mxu0 %v990
  %v1348 = vpop.f32.mrf.mxu0
  %v1349 = vadd.f32 %v1125, %v1348
  %v1350 = vpop.f32.mrf.mxu0
  %1351 = vmatprep.mubr.f32.mxu0 0.0
  %1352 = vmatmul.mubr.f32.gmra.mxu0 %v991
  %v1353 = vpop.f32.mrf.mxu0
  %v1354 = vadd.f32 %v1130, %v1353
  %v1355 = vpop.f32.mrf.mxu0
  %1356 = vmatprep.mubr.f32.mxu0 0.0
  %1357 = vmatmul.mubr.f32.gmra.mxu0 %v992
  %v1358 = vpop.f32.mrf.mxu0
  %v1359 = vadd.f32 %v1135, %v1358
  %v1360 = vpop.f32.mrf.mxu0
  %1361 = vmatprep.mubr.f32.mxu0 0.0
  %1362 = vmatmul.mubr.f32.gmra.mxu0 %v993
  %v1363 = vpop.f32.mrf.mxu0
  %v1364 = vadd.f32 %v1140, %v1363
  %v1365 = vpop.f32.mrf.mxu0
  %1366 = vmatprep.mubr.f32.mxu0 0.0
  %1367 = vmatmul.mubr.f32.gmra.mxu0 %v994
  %v1368 = vpop.f32.mrf.mxu0
  %v1369 = vadd.f32 %v1145, %v1368
  %v1370 = vpop.f32.mrf.mxu0
  %1371 = vmatprep.mubr.f32.mxu0 0.0
  %1372 = vmatmul.mubr.f32.gmra.mxu0 %v995
  %v1373 = vpop.f32.mrf.mxu0
  %v1374 = vadd.f32 %v1150, %v1373
  %v1375 = vpop.f32.mrf.mxu0
  %1376 = vmatprep.mubr.f32.mxu0 0.0
  %1377 = vmatmul.mubr.f32.gmra.mxu0 %v996
  %v1378 = vpop.f32.mrf.mxu0
  %v1379 = vadd.f32 %v1155, %v1378
  %v1380 = vpop.f32.mrf.mxu0
  %1381 = vmatprep.mubr.f32.mxu0 0.0
  %1382 = vmatmul.mubr.f32.gmra.mxu0 %v997
  %v1383 = vpop.f32.mrf.mxu0
  %v1384 = vadd.f32 %v1160, %v1383
  %v1385 = vpop.f32.mrf.mxu0
  %1386 = vmatprep.mubr.f32.mxu0 0.0
  %1387 = vmatmul.mubr.f32.gmra.mxu0 %v998
  %v1388 = vpop.f32.mrf.mxu0
  %v1389 = vadd.f32 %v1165, %v1388
  %v1390 = vpop.f32.mrf.mxu0
  %1391 = vmatprep.mubr.f32.mxu0 0.0
  %1392 = vmatmul.mubr.f32.gmra.mxu0 %v999
  %v1393 = vpop.f32.mrf.mxu0
  %v1394 = vadd.f32 %v1170, %v1393
  %v1395 = vpop.f32.mrf.mxu0
  %1396 = vmatprep.mubr.f32.mxu0 0.0
  %1397 = vmatmul.mubr.f32.gmra.mxu0 %v1000
  %v1398 = vpop.f32.mrf.mxu0
  %v1399 = vadd.f32 %v1175, %v1398
  %v1400 = vpop.f32.mrf.mxu0
  %1401 = vmatprep.mubr.f32.mxu0 0.0
  %1402 = vmatmul.mubr.f32.gmra.mxu0 %v1001
  %v1403 = vpop.f32.mrf.mxu0
  %v1404 = vadd.f32 %v1180, %v1403
  %v1405 = vpop.f32.mrf.mxu0
  %1406 = vmatprep.mubr.f32.mxu0 0.0
  %1407 = vmatmul.mubr.f32.gmra.mxu0 %v1002
  %v1408 = vpop.f32.mrf.mxu0
  %v1409 = vadd.f32 %v1185, %v1408
  %v1410 = vpop.f32.mrf.mxu0
  %1411 = vmatprep.mubr.f32.mxu0 0.0
  %1412 = vmatmul.mubr.f32.gmra.mxu0 %v1003
  %v1413 = vpop.f32.mrf.mxu0
  %v1414 = vadd.f32 %v1190, %v1413
  %v1415 = vpop.f32.mrf.mxu0
  %1416 = vmatprep.mubr.f32.mxu0 0.0
  %1417 = vmatmul.mubr.f32.gmra.mxu0 %v1004
  %v1418 = vpop.f32.mrf.mxu0
  %v1419 = vadd.f32 %v1195, %v1418
  %v1420 = vpop.f32.mrf.mxu0
  %1421 = vdwg.mxu0
  %v1422 = vmax.f32 %v1264, 0.0
  %v1423 = vmax.f32 %v1269, 0.0
  %v1424 = vmax.f32 %v1274, 0.0
  %v1425 = vmax.f32 %v1279, 0.0
  %v1426 = vmax.f32 %v1284, 0.0
  %v1427 = vmax.f32 %v1289, 0.0
  %v1428 = vmax.f32 %v1294, 0.0
  %v1429 = vmax.f32 %v1299, 0.0
  %v1430 = vmax.f32 %v1304, 0.0
  %v1431 = vmax.f32 %v1309, 0.0
  %v1432 = vmax.f32 %v1314, 0.0
  %v1433 = vmax.f32 %v1319, 0.0
  %v1434 = vmax.f32 %v1324, 0.0
  %v1435 = vmax.f32 %v1329, 0.0
  %v1436 = vmax.f32 %v1334, 0.0
  %v1437 = vmax.f32 %v1339, 0.0
  %v1438 = vmax.f32 %v1344, 0.0
  %v1439 = vmax.f32 %v1349, 0.0
  %v1440 = vmax.f32 %v1354, 0.0
  %v1441 = vmax.f32 %v1359, 0.0
  %v1442 = vmax.f32 %v1364, 0.0
  %v1443 = vmax.f32 %v1369, 0.0
  %v1444 = vmax.f32 %v1374, 0.0
  %v1445 = vmax.f32 %v1379, 0.0
  %v1446 = vmax.f32 %v1384, 0.0
  %v1447 = vmax.f32 %v1389, 0.0
  %v1448 = vmax.f32 %v1394, 0.0
  %v1449 = vmax.f32 %v1399, 0.0
  %v1450 = vmax.f32 %v1404, 0.0
  %v1451 = vmax.f32 %v1409, 0.0
  %v1452 = vmax.f32 %v1414, 0.0
  %v1453 = vmax.f32 %v1419, 0.0
  %v1454 = vld [vmem:[%s5] sm:$0xff]
  %v1455 = vld [vmem:[%s5 + $0x8] sm:$0xff]
  %v1456 = vld [vmem:[%s5 + $0x10] sm:$0xff]
  %v1457 = vld [vmem:[%s5 + $0x18] sm:$0xff]
  %v1458 = vld [vmem:[%s5 + $0x20] sm:$0xff]
  %v1459 = vld [vmem:[%s5 + $0x28] sm:$0xff]
  %v1460 = vld [vmem:[%s5 + $0x30] sm:$0xff]
  %v1461 = vld [vmem:[%s5 + $0x38] sm:$0xff]
  %v1462 = vld [vmem:[%s5 + $0x40] sm:$0xff]
  %v1463 = vld [vmem:[%s5 + $0x48] sm:$0xff]
  %v1464 = vld [vmem:[%s5 + $0x50] sm:$0xff]
  %v1465 = vld [vmem:[%s5 + $0x58] sm:$0xff]
  %v1466 = vld [vmem:[%s5 + $0x60] sm:$0xff]
  %v1467 = vld [vmem:[%s5 + $0x68] sm:$0xff]
  %v1468 = vld [vmem:[%s5 + $0x70] sm:$0xff]
  %v1469 = vld [vmem:[%s5 + $0x78] sm:$0xff]
  %v1470 = vld [vmem:[%s5 + $0x80] sm:$0xff]
  %v1471 = vld [vmem:[%s5 + $0x88] sm:$0xff]
  %v1472 = vld [vmem:[%s5 + $0x90] sm:$0xff]
  %v1473 = vld [vmem:[%s5 + $0x98] sm:$0xff]
  %v1474 = vld [vmem:[%s5 + $0xa0] sm:$0xff]
  %v1475 = vld [vmem:[%s5 + $0xa8] sm:$0xff]
  %v1476 = vld [vmem:[%s5 + $0xb0] sm:$0xff]
  %v1477 = vld [vmem:[%s5 + $0xb8] sm:$0xff]
  %v1478 = vld [vmem:[%s5 + $0xc0] sm:$0xff]
  %v1479 = vld [vmem:[%s5 + $0xc8] sm:$0xff]
  %v1480 = vld [vmem:[%s5 + $0xd0] sm:$0xff]
  %v1481 = vld [vmem:[%s5 + $0xd8] sm:$0xff]
  %v1482 = vld [vmem:[%s5 + $0xe0] sm:$0xff]
  %v1483 = vld [vmem:[%s5 + $0xe8] sm:$0xff]
  %v1484 = vld [vmem:[%s5 + $0xf0] sm:$0xff]
  %v1485 = vld [vmem:[%s5 + $0xf8] sm:$0xff]
  %1487 = vset.pattern.permute.xlu0 0
  %1488 = vperm.xlu0 %1487, %v1454
  %v1489 = vpop.permute.xlu0 %1488
  %1492 = vset.pattern.permute.xlu0 0
  %1493 = vperm.xlu0 %1492, %v1455
  %v1494 = vpop.permute.xlu0 %1493
  %1497 = vset.pattern.permute.xlu0 0
  %1498 = vperm.xlu0 %1497, %v1456
  %v1499 = vpop.permute.xlu0 %1498
  %1502 = vset.pattern.permute.xlu0 0
  %1503 = vperm.xlu0 %1502, %v1457
  %v1504 = vpop.permute.xlu0 %1503
  %1507 = vset.pattern.permute.xlu0 0
  %1508 = vperm.xlu0 %1507, %v1458
  %v1509 = vpop.permute.xlu0 %1508
  %1512 = vset.pattern.permute.xlu0 0
  %1513 = vperm.xlu0 %1512, %v1459
  %v1514 = vpop.permute.xlu0 %1513
  %1517 = vset.pattern.permute.xlu0 0
  %1518 = vperm.xlu0 %1517, %v1460
  %v1519 = vpop.permute.xlu0 %1518
  %1522 = vset.pattern.permute.xlu0 0
  %1523 = vperm.xlu0 %1522, %v1461
  %v1524 = vpop.permute.xlu0 %1523
  %1527 = vset.pattern.permute.xlu0 0
  %1528 = vperm.xlu0 %1527, %v1462
  %v1529 = vpop.permute.xlu0 %1528
  %1532 = vset.pattern.permute.xlu0 0
  %1533 = vperm.xlu0 %1532, %v1463
  %v1534 = vpop.permute.xlu0 %1533
  %1537 = vset.pattern.permute.xlu0 0
  %1538 = vperm.xlu0 %1537, %v1464
  %v1539 = vpop.permute.xlu0 %1538
  %1542 = vset.pattern.permute.xlu0 0
  %1543 = vperm.xlu0 %1542, %v1465
  %v1544 = vpop.permute.xlu0 %1543
  %1547 = vset.pattern.permute.xlu0 0
  %1548 = vperm.xlu0 %1547, %v1466
  %v1549 = vpop.permute.xlu0 %1548
  %1552 = vset.pattern.permute.xlu0 0
  %1553 = vperm.xlu0 %1552, %v1467
  %v1554 = vpop.permute.xlu0 %1553
  %1557 = vset.pattern.permute.xlu0 0
  %1558 = vperm.xlu0 %1557, %v1468
  %v1559 = vpop.permute.xlu0 %1558
  %1562 = vset.pattern.permute.xlu0 0
  %1563 = vperm.xlu0 %1562, %v1469
  %v1564 = vpop.permute.xlu0 %1563
  %1567 = vset.pattern.permute.xlu0 0
  %1568 = vperm.xlu0 %1567, %v1470
  %v1569 = vpop.permute.xlu0 %1568
  %1572 = vset.pattern.permute.xlu0 0
  %1573 = vperm.xlu0 %1572, %v1471
  %v1574 = vpop.permute.xlu0 %1573
  %1577 = vset.pattern.permute.xlu0 0
  %1578 = vperm.xlu0 %1577, %v1472
  %v1579 = vpop.permute.xlu0 %1578
  %1582 = vset.pattern.permute.xlu0 0
  %1583 = vperm.xlu0 %1582, %v1473
  %v1584 = vpop.permute.xlu0 %1583
  %1587 = vset.pattern.permute.xlu0 0
  %1588 = vperm.xlu0 %1587, %v1474
  %v1589 = vpop.permute.xlu0 %1588
  %1592 = vset.pattern.permute.xlu0 0
  %1593 = vperm.xlu0 %1592, %v1475
  %v1594 = vpop.permute.xlu0 %1593
  %1597 = vset.pattern.permute.xlu0 0
  %1598 = vperm.xlu0 %1597, %v1476
  %v1599 = vpop.permute.xlu0 %1598
  %1602 = vset.pattern.permute.xlu0 0
  %1603 = vperm.xlu0 %1602, %v1477
  %v1604 = vpop.permute.xlu0 %1603
  %1607 = vset.pattern.permute.xlu0 0
  %1608 = vperm.xlu0 %1607, %v1478
  %v1609 = vpop.permute.xlu0 %1608
  %1612 = vset.pattern.permute.xlu0 0
  %1613 = vperm.xlu0 %1612, %v1479
  %v1614 = vpop.permute.xlu0 %1613
  %1617 = vset.pattern.permute.xlu0 0
  %1618 = vperm.xlu0 %1617, %v1480
  %v1619 = vpop.permute.xlu0 %1618
  %1622 = vset.pattern.permute.xlu0 0
  %1623 = vperm.xlu0 %1622, %v1481
  %v1624 = vpop.permute.xlu0 %1623
  %1627 = vset.pattern.permute.xlu0 0
  %1628 = vperm.xlu0 %1627, %v1482
  %v1629 = vpop.permute.xlu0 %1628
  %1632 = vset.pattern.permute.xlu0 0
  %1633 = vperm.xlu0 %1632, %v1483
  %v1634 = vpop.permute.xlu0 %1633
  %1637 = vset.pattern.permute.xlu0 0
  %1638 = vperm.xlu0 %1637, %v1484
  %v1639 = vpop.permute.xlu0 %1638
  %1642 = vset.pattern.permute.xlu0 0
  %1643 = vperm.xlu0 %1642, %v1485
  %v1644 = vpop.permute.xlu0 %1643
  %v1646 = vmul.f32 %v1422, %v1489
  %v1647 = vmul.f32 %v1423, %v1494
  %v1648 = vmul.f32 %v1424, %v1499
  %v1649 = vmul.f32 %v1425, %v1504
  %v1650 = vmul.f32 %v1426, %v1509
  %v1651 = vmul.f32 %v1427, %v1514
  %v1652 = vmul.f32 %v1428, %v1519
  %v1653 = vmul.f32 %v1429, %v1524
  %v1654 = vmul.f32 %v1430, %v1529
  %v1655 = vmul.f32 %v1431, %v1534
  %v1656 = vmul.f32 %v1432, %v1539
  %v1657 = vmul.f32 %v1433, %v1544
  %v1658 = vmul.f32 %v1434, %v1549
  %v1659 = vmul.f32 %v1435, %v1554
  %v1660 = vmul.f32 %v1436, %v1559
  %v1661 = vmul.f32 %v1437, %v1564
  %v1662 = vmul.f32 %v1438, %v1569
  %v1663 = vmul.f32 %v1439, %v1574
  %v1664 = vmul.f32 %v1440, %v1579
  %v1665 = vmul.f32 %v1441, %v1584
  %v1666 = vmul.f32 %v1442, %v1589
  %v1667 = vmul.f32 %v1443, %v1594
  %v1668 = vmul.f32 %v1444, %v1599
  %v1669 = vmul.f32 %v1445, %v1604
  %v1670 = vmul.f32 %v1446, %v1609
  %v1671 = vmul.f32 %v1447, %v1614
  %v1672 = vmul.f32 %v1448, %v1619
  %v1673 = vmul.f32 %v1449, %v1624
  %v1674 = vmul.f32 %v1450, %v1629
  %v1675 = vmul.f32 %v1451, %v1634
  %v1676 = vmul.f32 %v1452, %v1639
  %v1677 = vmul.f32 %v1453, %v1644
  %v1678 = vadd.f32 %v1646, %v1647
  %v1679 = vadd.f32 %v1678, %v1648
  %v1680 = vadd.f32 %v1679, %v1649
  %v1681 = vadd.f32 %v1680, %v1650
  %v1682 = vadd.f32 %v1681, %v1651
  %v1683 = vadd.f32 %v1682, %v1652
  %v1684 = vadd.f32 %v1683, %v1653
  %v1685 = vadd.f32 %v1684, %v1654
  %v1686 = vadd.f32 %v1685, %v1655
  %v1687 = vadd.f32 %v1686, %v1656
  %v1688 = vadd.f32 %v1687, %v1657
  %v1689 = vadd.f32 %v1688, %v1658
  %v1690 = vadd.f32 %v1689, %v1659
  %v1691 = vadd.f32 %v1690, %v1660
  %v1692 = vadd.f32 %v1691, %v1661
  %v1693 = vadd.f32 %v1692, %v1662
  %v1694 = vadd.f32 %v1693, %v1663
  %v1695 = vadd.f32 %v1694, %v1664
  %v1696 = vadd.f32 %v1695, %v1665
  %v1697 = vadd.f32 %v1696, %v1666
  %v1698 = vadd.f32 %v1697, %v1667
  %v1699 = vadd.f32 %v1698, %v1668
  %v1700 = vadd.f32 %v1699, %v1669
  %v1701 = vadd.f32 %v1700, %v1670
  %v1702 = vadd.f32 %v1701, %v1671
  %v1703 = vadd.f32 %v1702, %v1672
  %v1704 = vadd.f32 %v1703, %v1673
  %v1705 = vadd.f32 %v1704, %v1674
  %v1706 = vadd.f32 %v1705, %v1675
  %v1707 = vadd.f32 %v1706, %v1676
  %v1708 = vadd.f32 %v1707, %v1677
  %v1709 = vrot.slane %v1708, 4
  %v1710 = vadd.f32 %v1708, %v1709
  %v1711 = vrot.slane %v1710, 2
  %v1712 = vadd.f32 %v1710, %v1711
  %v1713 = vrot.slane %v1712, 1
  %v1714 = vadd.f32 %v1712, %v1713
  %v1715 = vld [vmem:[#allocation2] sm:$0x1]
  %1717 = vset.pattern.permute.xlu0 0
  %1718 = vperm.xlu0 %1717, %v1715
  %v1719 = vpop.permute.xlu0 %1718
  %v1721 = vlaneseq
  %v1722 = vshrl.u32 %v1721, 7
  %v1723 = vsub.s32 0, %v1722
  %v1724 = vrot.slane %v1719, %v1723
  %v1725 = vadd.f32 %v1714, %v1724
  %1726 = vst [vmem:[%s7] sm:$0x1] %v1725
  // Predicated region
  $region30: #{critic_forward.1} parent=0 // pred_check
    _
  $region31: #{critic_forward.1} parent=0 // pred_check_branch
    %1728 = sbr.rel (0) target = $region33
  $region32: #{critic_forward.1} parent=0 // pred_region
    _
  $region33: #{critic_forward.1} parent=0 // pred_fallthru
    _
  // Predicated region
  $region34: #{critic_forward.1} parent=0 // pred_check
    _
  $region35: #{critic_forward.1} parent=0 // pred_check_branch
    %1730 = sbr.rel (0) target = $region37
  $region36: #{critic_forward.1} parent=0 // pred_region
    _
  $region37: #{critic_forward.1} parent=0 // pred_fallthru
    _

</llo_original>
